<compile_context>
chip_gen: v7x
topology: tpu7x:2x2x1
jax: 0.10.0
libtpu: 0.0.40
codegen_flags: <defaults>
</compile_context>

<pallas_src>
import math

import numpy as np
import jax
import jax.numpy as jnp
from jax.experimental import pallas as pl
from jax.experimental.pallas import tpu as pltpu


# --------------------------------------------------------------------------
# Pallas kernel: whole NODEBlock forward for one batch tile.
# --------------------------------------------------------------------------
def node_block_kernel(x_ref, wd_ref, bd_ref, selall_ref, sign_ref, offs_ref,
                      lvsel_ref, wa_ref, ba_ref, wf_ref, bf_ref, out_ref):
    tl = lvsel_ref.shape[0]                    # T * num_leaves (= 128 at default sizes)
    depth = selall_ref.shape[1] // tl          # tree depth

    x = x_ref[...]                                                        # (TB, D)

    # ---- all trees' decision linears at once: sigmoid(x @ Wd + bd) (f32 elementwise) ----
    z = jnp.dot(x, wd_ref[...], preferred_element_type=jnp.float32) + bd_ref[...]
    d = jax.nn.sigmoid(z)                                                 # (TB, T*depth) f32

    # ---- fused selector matmul: one MXU push with N = depth*T*L ----
    dk_all = jnp.dot(d.astype(selall_ref.dtype), selall_ref[...],
                     preferred_element_type=jnp.float32)                  # (TB, depth*T*L)

    # ---- leaf reach probabilities: single FMA, then running product over depth ----
    # term[:, k*TL + j] = (1-c) + (2c-1)*d == d*c + (1-d)*(1-c)
    term = offs_ref[...] + sign_ref[...] * dk_all                         # one big FMA
    lp = term[:, 0:tl]                                                    # seed from k=0
    for k in range(1, depth):                                             # static unroll
        lp = lp * term[:, k * tl:(k + 1) * tl]                            # 128-aligned slices

    # ---- per-tree weighted sum of leaf values (block-diag leaf-value matmul) ----
    tree_outs = jnp.dot(lp.astype(lvsel_ref.dtype), lvsel_ref[...],
                        preferred_element_type=jnp.float32)               # (TB, T)

    # ---- attention gating: softmax(tree_outs @ Wa^T + ba) over trees ----
    attn = jnp.dot(tree_outs, wa_ref[...], preferred_element_type=jnp.float32) + ba_ref[...]
    attn = attn - jnp.max(attn, axis=1, keepdims=True)
    e = jnp.exp(attn)
    inv = pl.reciprocal(jnp.sum(e, axis=1, keepdims=True), approx=True)   # EUP, not VALU
    gated = tree_outs * (e * inv)

    # ---- BatchNorm1d(eval) + Dropout(eval) folded into (wf, bf) host-side ----
    out = jnp.dot(gated.astype(wf_ref.dtype), wf_ref[...],
                  preferred_element_type=jnp.float32) + bf_ref[...]
    out_ref[...] = out.astype(out_ref.dtype)


# --------------------------------------------------------------------------
# Wrapper
# --------------------------------------------------------------------------
def node_block_forward(x, params, *, tile_b=128):
    """tile_b: batch tile (MXU M-dim). Sweep 128-512; use multiples of 256 on v6e/v7x,
    128 on v5e. Keep (B_pad // tile_b) >= 2 on v7x at large B so both TCs are used."""
    B, D = x.shape
    wd = params["wd"]            # (D, T*depth)              [f32 or bf16]
    bd = params["bd"]            # (1, T*depth)               f32
    selall = params["selall"]    # (T*depth, depth*T*L)       [f32 or bf16]
    sign = params["sign"]        # (1, depth*T*L)             f32
    offs = params["offs"]        # (1, depth*T*L)             f32
    lvsel = params["lvsel"]      # (T*L, T)                   [f32 or bf16]
    wa = params["wa_t"]          # (T, T)   (= attn_fc.weight.T)
    ba = params["ba"]            # (1, T)
    wf = params["wf_t"]          # (T, D)   (= fc.weight.T, BN folded in)  [f32 or bf16]
    bf = params["bf"]            # (1, D)   (BN folded in)

    # Feed MXU operands in the weights' dtype (bf16 on v6e/v7x); accumulation stays f32.
    x = x.astype(wd.dtype)

    # Pad batch to a multiple of tile_b (padded rows are computed and discarded).
    n_tiles = pl.cdiv(B, tile_b)
    B_pad = n_tiles * tile_b
    if B_pad != B:
        x = jnp.pad(x, ((0, B_pad - B), (0, 0)))

    # Constant (grid-invariant) operands: full-array blocks at block index 0.
    # (On v7x one could add pipeline_mode=pl.Buffered(1) here to skip the second
    #  pipeline buffer; skipped since all weights total well under 1 MiB.)
    full = lambda a: pl.BlockSpec(a.shape, lambda i, n=a.ndim: (0,) * n)

    out = pl.pallas_call(
        node_block_kernel,
        out_shape=jax.ShapeDtypeStruct((B_pad, D), jnp.float32),
        grid=(n_tiles,),
        in_specs=[
            pl.BlockSpec((tile_b, D), lambda i: (i, 0)),   # x (batch-tiled)
            full(wd), full(bd), full(selall), full(sign), full(offs),
            full(lvsel), full(wa), full(ba), full(wf), full(bf),
        ],
        out_specs=pl.BlockSpec((tile_b, D), lambda i: (i, 0)),
        compiler_params=pltpu.CompilerParams(dimension_semantics=("parallel",)),
    )(x, wd, bd, selall, sign, offs, lvsel, wa, ba, wf, bf)
    return out[:B]


# --------------------------------------------------------------------------
# Deterministic parameter construction (mirrors the PyTorch __init__ shapes)
# --------------------------------------------------------------------------
def build_params(input_dim, num_trees, tree_depth, key):
    D, T, depth = input_dim, num_trees, tree_depth
    L = 2 ** depth
    ks = jax.random.split(key, 8)

    # per-tree Linear(input_dim, tree_depth)
    b1 = 1.0 / math.sqrt(D)
    w_dec = jax.random.uniform(ks[0], (T, depth, D), minval=-b1, maxval=b1, dtype=jnp.float32)
    b_dec = jax.random.uniform(ks[1], (T, depth), minval=-b1, maxval=b1, dtype=jnp.float32)
    leaf_values = jax.random.normal(ks[2], (T, L), dtype=jnp.float32)

    # attn_fc: Linear(T, T);  fc: Linear(T, D)
    b2 = 1.0 / math.sqrt(T)
    w_attn = jax.random.uniform(ks[3], (T, T), minval=-b2, maxval=b2, dtype=jnp.float32)
    b_attn = jax.random.uniform(ks[4], (T,), minval=-b2, maxval=b2, dtype=jnp.float32)
    w_fc = jax.random.uniform(ks[5], (D, T), minval=-b2, maxval=b2, dtype=jnp.float32)
    b_fc = jax.random.uniform(ks[6], (D,), minval=-b2, maxval=b2, dtype=jnp.float32)

    # BatchNorm1d(T) default init / running stats (eval mode)
    gamma = jnp.ones((T,), jnp.float32)
    beta = jnp.zeros((T,), jnp.float32)
    run_mean = jnp.zeros((T,), jnp.float32)
    run_var = jnp.ones((T,), jnp.float32)
    eps = 1e-5

    # leaf binary codes: codes[l, k] = k-th bit (MSB first) of l
    codes = np.zeros((L, depth), dtype=np.float32)
    for l in range(L):
        for k in range(depth):
            codes[l, k] = (l >> (depth - 1 - k)) & 1

    # selector matrices: Sel[k, t*depth+k, t*L+l] = 1  -> fused along columns
    sel = np.zeros((depth, T * depth, T * L), dtype=np.float32)
    for k in range(depth):
        for t in range(T):
            sel[k, t * depth + k, t * L:(t + 1) * L] = 1.0
    selall = np.concatenate([sel[k] for k in range(depth)], axis=1)       # (T*depth, depth*T*L)

    # cmask[k, t*L+l] = codes[l, k]  ->  sign = 2c-1, offs = 1-c  (flattened like selall cols)
    cmask = np.tile(codes.T, (1, T)).astype(np.float32)                   # (depth, T*L)
    sign = (2.0 * cmask - 1.0).reshape(1, depth * T * L)
    offs = (1.0 - cmask).reshape(1, depth * T * L)

    # block-diagonal leaf-value matrix: lvsel[t*L+l, t] = leaf_values[t, l]
    lv_np = np.asarray(leaf_values)
    lvsel = np.zeros((T * L, T), dtype=np.float32)
    for t in range(T):
        lvsel[t * L:(t + 1) * L, t] = lv_np[t]

    # fold eval-BN affine into the output projection
    bn_scale = np.asarray(gamma / jnp.sqrt(run_var + eps))                # (T,)
    bn_shift = np.asarray(beta - run_mean * (gamma / jnp.sqrt(run_var + eps)))
    wf_t = np.asarray(w_fc).T                                             # (T, D)
    wf_folded = bn_scale[:, None] * wf_t                                  # (T, D)
    bf_folded = bn_shift.reshape(1, T) @ wf_t + np.asarray(b_fc).reshape(1, D)

    params = dict(
        wd=jnp.asarray(w_dec).reshape(T * depth, D).T,                    # (D, T*depth)
        bd=jnp.asarray(b_dec).reshape(1, T * depth),
        selall=jnp.asarray(selall),
        sign=jnp.asarray(sign),
        offs=jnp.asarray(offs),
        lvsel=jnp.asarray(lvsel),
        wa_t=w_attn.T,
        ba=b_attn.reshape(1, T),
        wf_t=jnp.asarray(wf_folded),
        bf=jnp.asarray(bf_folded),
    )
    raw = dict(w_dec=w_dec, b_dec=b_dec, leaf_values=leaf_values, codes=jnp.asarray(codes),
               w_attn=w_attn, b_attn=b_attn, w_fc=w_fc, b_fc=b_fc,
               gamma=gamma, beta=beta, run_mean=run_mean, run_var=run_var, eps=eps)
    return params, raw


def cast_mxu_params(params, dtype=jnp.bfloat16):
    """Cast only the MXU operand matrices (selectors are exactly representable in bf16);
    biases / sign / offs stay f32 and all elementwise math stays f32 in-kernel."""
    p = dict(params)
    for k in ("wd", "selall", "lvsel", "wf_t"):
        p[k] = params[k].astype(dtype)
    return p


# --------------------------------------------------------------------------
# Pure-JAX reference (direct transcription of the PyTorch forward, eval mode)
# --------------------------------------------------------------------------
def reference_forward(x, raw, num_trees, tree_depth):
    T, depth = num_trees, tree_depth
    B, D = x.shape
    d = jax.nn.sigmoid(x @ raw["w_dec"].reshape(T * depth, D).T
                       + raw["b_dec"].reshape(-1))                        # (B, T*depth)
    d = d.reshape(B, T, depth)
    c = raw["codes"]                                                      # (L, depth)
    lp = d[:, :, None, :] * c[None, None] + (1 - d[:, :, None, :]) * (1 - c[None, None])
    lp = jnp.prod(lp, axis=3)                                             # (B, T, L)
    tree_outs = jnp.sum(lp * raw["leaf_values"][None], axis=2)            # (B, T)
    attn = jax.nn.softmax(tree_outs @ raw["w_attn"].T + raw["b_attn"], axis=1)
    gated = tree_outs * attn
    normed = (gated - raw["run_mean"]) / jnp.sqrt(raw["run_var"] + raw["eps"]) \
             * raw["gamma"] + raw["beta"]
    return normed @ raw["w_fc"].T + raw["b_fc"]


if __name__ == "__main__":
    INPUT_DIM = 32
    NUM_TREES = 8
    TREE_DEPTH = 4
    BATCH = 16

    key = jax.random.PRNGKey(0)
    k_param, k_x = jax.random.split(key)
    params, raw = build_params(INPUT_DIM, NUM_TREES, TREE_DEPTH, k_param)
    x = jax.random.normal(k_x, (BATCH, INPUT_DIM), dtype=jnp.float32)

    ref = reference_forward(x, raw, NUM_TREES, TREE_DEPTH)

    # f32-operand path (v5e-friendly). Tolerance accounts for the EUP approx reciprocal.
    out = jax.block_until_ready(node_block_forward(x, params, tile_b=128))
    if not jnp.allclose(out, ref, rtol=5e-3, atol=5e-3):
        raise AssertionError("Pallas NODEBlock (f32 MXU) does not match JAX reference")

    # bf16 MXU-operand path (v6e/v7x): f32 accumulation + f32 elementwise, looser tolerance.
    params_bf16 = cast_mxu_params(params, jnp.bfloat16)
    out_bf16 = jax.block_until_ready(node_block_forward(x, params_bf16, tile_b=128))
    if not jnp.allclose(out_bf16, ref, rtol=5e-2, atol=5e-2):
        raise AssertionError("Pallas NODEBlock (bf16 MXU) does not match JAX reference")

    print("KERNEL_OK")
</pallas_src>

<mosaic_0001>
module attributes {stable_mosaic.version = 11 : i64} {
  func.func @node_block_kernel(%arg0: i32, %arg1: memref<128x32xf32, #tpu.memory_space<vmem>>, %arg2: memref<32x32xf32, #tpu.memory_space<vmem>>, %arg3: memref<1x32xf32, #tpu.memory_space<vmem>>, %arg4: memref<32x512xf32, #tpu.memory_space<vmem>>, %arg5: memref<1x512xf32, #tpu.memory_space<vmem>>, %arg6: memref<1x512xf32, #tpu.memory_space<vmem>>, %arg7: memref<128x8xf32, #tpu.memory_space<vmem>>, %arg8: memref<8x8xf32, #tpu.memory_space<vmem>>, %arg9: memref<1x8xf32, #tpu.memory_space<vmem>>, %arg10: memref<8x32xf32, #tpu.memory_space<vmem>>, %arg11: memref<1x32xf32, #tpu.memory_space<vmem>>, %arg12: memref<128x32xf32, #tpu.memory_space<vmem>>) attributes {dimension_semantics = [#tpu.dimension_semantics<parallel>], iteration_bounds = array<i64: 1>, scalar_prefetch = 0 : i64, scratch_operands = 0 : i64, tpu.core_type = #tpu.core_type<tc>, window_params = [{transform_indices = @transform_0, window_bounds = array<i64: 128, 32>}, {pipeline_mode = #tpu.pipeline_mode<synchronous>, transform_indices = @transform_1, window_bounds = array<i64: 32, 32>}, {pipeline_mode = #tpu.pipeline_mode<synchronous>, transform_indices = @transform_2, window_bounds = array<i64: 1, 32>}, {pipeline_mode = #tpu.pipeline_mode<synchronous>, transform_indices = @transform_3, window_bounds = array<i64: 32, 512>}, {pipeline_mode = #tpu.pipeline_mode<synchronous>, transform_indices = @transform_4, window_bounds = array<i64: 1, 512>}, {pipeline_mode = #tpu.pipeline_mode<synchronous>, transform_indices = @transform_5, window_bounds = array<i64: 1, 512>}, {pipeline_mode = #tpu.pipeline_mode<synchronous>, transform_indices = @transform_6, window_bounds = array<i64: 128, 8>}, {pipeline_mode = #tpu.pipeline_mode<synchronous>, transform_indices = @transform_7, window_bounds = array<i64: 8, 8>}, {pipeline_mode = #tpu.pipeline_mode<synchronous>, transform_indices = @transform_8, window_bounds = array<i64: 1, 8>}, {pipeline_mode = #tpu.pipeline_mode<synchronous>, transform_indices = @transform_9, window_bounds = array<i64: 8, 32>}, {pipeline_mode = #tpu.pipeline_mode<synchronous>, transform_indices = @transform_10, window_bounds = array<i64: 1, 32>}, {transform_indices = @transform_11, window_bounds = array<i64: 128, 32>}]} {
    %c0 = arith.constant 0 : index
    %c0_0 = arith.constant 0 : index
    %0 = vector.load %arg1[%c0, %c0_0] : memref<128x32xf32, #tpu.memory_space<vmem>>, vector<128x32xf32>
    %c0_1 = arith.constant 0 : index
    %c0_2 = arith.constant 0 : index
    %1 = vector.load %arg2[%c0_1, %c0_2] : memref<32x32xf32, #tpu.memory_space<vmem>>, vector<32x32xf32>
    %cst = arith.constant dense<0.000000e+00> : vector<128x32xf32>
    %2 = tpu.matmul %0, %1, %cst {dimension_numbers = #tpu.dot_dimension_numbers<[1], [0], [0], [1], [0, 0, 1, 1], [], []>} : vector<128x32xf32>, vector<32x32xf32>, vector<128x32xf32> -> vector<128x32xf32>
    %c0_3 = arith.constant 0 : index
    %c0_4 = arith.constant 0 : index
    %3 = vector.load %arg3[%c0_3, %c0_4] : memref<1x32xf32, #tpu.memory_space<vmem>>, vector<1x32xf32>
    %4 = vector.broadcast %3 : vector<1x32xf32> to vector<128x32xf32>
    %5 = arith.addf %2, %4 : vector<128x32xf32>
    %6 = arith.negf %5 : vector<128x32xf32>
    %7 = math.exp %6 : vector<128x32xf32>
    %cst_5 = arith.constant 1.000000e+00 : f32
    %8 = vector.broadcast %cst_5 : f32 to vector<128x32xf32>
    %9 = arith.addf %8, %7 : vector<128x32xf32>
    %10 = arith.divf %8, %9 : vector<128x32xf32>
    %c0_6 = arith.constant 0 : index
    %c0_7 = arith.constant 0 : index
    %11 = vector.load %arg4[%c0_6, %c0_7] : memref<32x512xf32, #tpu.memory_space<vmem>>, vector<32x512xf32>
    %cst_8 = arith.constant dense<0.000000e+00> : vector<128x512xf32>
    %12 = tpu.matmul %10, %11, %cst_8 {dimension_numbers = #tpu.dot_dimension_numbers<[1], [0], [0], [1], [0, 0, 1, 1], [], []>} : vector<128x32xf32>, vector<32x512xf32>, vector<128x512xf32> -> vector<128x512xf32>
    %c0_9 = arith.constant 0 : index
    %c0_10 = arith.constant 0 : index
    %13 = vector.load %arg6[%c0_9, %c0_10] : memref<1x512xf32, #tpu.memory_space<vmem>>, vector<1x512xf32>
    %c0_11 = arith.constant 0 : index
    %c0_12 = arith.constant 0 : index
    %14 = vector.load %arg5[%c0_11, %c0_12] : memref<1x512xf32, #tpu.memory_space<vmem>>, vector<1x512xf32>
    %15 = vector.broadcast %14 : vector<1x512xf32> to vector<128x512xf32>
    %16 = arith.mulf %15, %12 : vector<128x512xf32>
    %17 = vector.broadcast %13 : vector<1x512xf32> to vector<128x512xf32>
    %18 = arith.addf %17, %16 : vector<128x512xf32>
    %19 = vector.extract_strided_slice %18 {offsets = [0, 0], sizes = [128, 128], strides = [1, 1]} : vector<128x512xf32> to vector<128x128xf32>
    %20 = vector.extract_strided_slice %18 {offsets = [0, 128], sizes = [128, 128], strides = [1, 1]} : vector<128x512xf32> to vector<128x128xf32>
    %21 = arith.mulf %19, %20 : vector<128x128xf32>
    %22 = vector.extract_strided_slice %18 {offsets = [0, 256], sizes = [128, 128], strides = [1, 1]} : vector<128x512xf32> to vector<128x128xf32>
    %23 = arith.mulf %21, %22 : vector<128x128xf32>
    %24 = vector.extract_strided_slice %18 {offsets = [0, 384], sizes = [128, 128], strides = [1, 1]} : vector<128x512xf32> to vector<128x128xf32>
    %25 = arith.mulf %23, %24 : vector<128x128xf32>
    %c0_13 = arith.constant 0 : index
    %c0_14 = arith.constant 0 : index
    %26 = vector.load %arg7[%c0_13, %c0_14] : memref<128x8xf32, #tpu.memory_space<vmem>>, vector<128x8xf32>
    %cst_15 = arith.constant dense<0.000000e+00> : vector<128x8xf32>
    %27 = tpu.matmul %25, %26, %cst_15 {dimension_numbers = #tpu.dot_dimension_numbers<[1], [0], [0], [1], [0, 0, 1, 1], [], []>} : vector<128x128xf32>, vector<128x8xf32>, vector<128x8xf32> -> vector<128x8xf32>
    %c0_16 = arith.constant 0 : index
    %c0_17 = arith.constant 0 : index
    %28 = vector.load %arg8[%c0_16, %c0_17] : memref<8x8xf32, #tpu.memory_space<vmem>>, vector<8x8xf32>
    %cst_18 = arith.constant dense<0.000000e+00> : vector<128x8xf32>
    %29 = tpu.matmul %27, %28, %cst_18 {dimension_numbers = #tpu.dot_dimension_numbers<[1], [0], [0], [1], [0, 0, 1, 1], [], []>} : vector<128x8xf32>, vector<8x8xf32>, vector<128x8xf32> -> vector<128x8xf32>
    %c0_19 = arith.constant 0 : index
    %c0_20 = arith.constant 0 : index
    %30 = vector.load %arg9[%c0_19, %c0_20] : memref<1x8xf32, #tpu.memory_space<vmem>>, vector<1x8xf32>
    %31 = vector.broadcast %30 : vector<1x8xf32> to vector<128x8xf32>
    %32 = arith.addf %29, %31 : vector<128x8xf32>
    %cst_21 = arith.constant dense<0xFF800000> : vector<128xf32>
    %33 = vector.multi_reduction <maximumf>, %32, %cst_21 [1] : vector<128x8xf32> to vector<128xf32>
    %34 = vector.shape_cast %33 : vector<128xf32> to vector<128x1xf32>
    %35 = vector.broadcast %34 : vector<128x1xf32> to vector<128x8xf32>
    %36 = arith.subf %32, %35 : vector<128x8xf32>
    %37 = math.exp %36 : vector<128x8xf32>
    %cst_22 = arith.constant dense<0.000000e+00> : vector<128xf32>
    %38 = vector.multi_reduction <add>, %37, %cst_22 [1] : vector<128x8xf32> to vector<128xf32>
    %39 = vector.shape_cast %38 : vector<128xf32> to vector<128x1xf32>
    %40 = tpu.reciprocal %39 {approx = true} : vector<128x1xf32> -> vector<128x1xf32>
    %41 = vector.broadcast %40 : vector<128x1xf32> to vector<128x8xf32>
    %42 = arith.mulf %37, %41 : vector<128x8xf32>
    %43 = arith.mulf %27, %42 : vector<128x8xf32>
    %c0_23 = arith.constant 0 : index
    %c0_24 = arith.constant 0 : index
    %44 = vector.load %arg10[%c0_23, %c0_24] : memref<8x32xf32, #tpu.memory_space<vmem>>, vector<8x32xf32>
    %cst_25 = arith.constant dense<0.000000e+00> : vector<128x32xf32>
    %45 = tpu.matmul %43, %44, %cst_25 {dimension_numbers = #tpu.dot_dimension_numbers<[1], [0], [0], [1], [0, 0, 1, 1], [], []>} : vector<128x8xf32>, vector<8x32xf32>, vector<128x32xf32> -> vector<128x32xf32>
    %c0_26 = arith.constant 0 : index
    %c0_27 = arith.constant 0 : index
    %46 = vector.load %arg11[%c0_26, %c0_27] : memref<1x32xf32, #tpu.memory_space<vmem>>, vector<1x32xf32>
    %47 = vector.broadcast %46 : vector<1x32xf32> to vector<128x32xf32>
    %48 = arith.addf %45, %47 : vector<128x32xf32>
    %c0_28 = arith.constant 0 : index
    %c0_29 = arith.constant 0 : index
    %49 = vector.load %arg12[%c0_28, %c0_29] : memref<128x32xf32, #tpu.memory_space<vmem>>, vector<128x32xf32>
    tpu.vector_store %arg12[%c0_28, %c0_29], %48 {strides = array<i32>} : memref<128x32xf32, #tpu.memory_space<vmem>>, vector<128x32xf32>,
    return
  }
  func.func @transform_0(%arg0: i32) -> (i32, i32) {
    %c0_i32 = arith.constant 0 : i32
    %c0_i32_0 = arith.constant 0 : i32
    return %arg0, %c0_i32 : i32, i32
  }
  func.func @transform_1(%arg0: i32) -> (i32, i32) {
    %c0_i32 = arith.constant 0 : i32
    %c0_i32_0 = arith.constant 0 : i32
    %c0_i32_1 = arith.constant 0 : i32
    return %c0_i32, %c0_i32_0 : i32, i32
  }
  func.func @transform_2(%arg0: i32) -> (i32, i32) {
    %c0_i32 = arith.constant 0 : i32
    %c0_i32_0 = arith.constant 0 : i32
    %c0_i32_1 = arith.constant 0 : i32
    return %c0_i32, %c0_i32_0 : i32, i32
  }
  func.func @transform_3(%arg0: i32) -> (i32, i32) {
    %c0_i32 = arith.constant 0 : i32
    %c0_i32_0 = arith.constant 0 : i32
    %c0_i32_1 = arith.constant 0 : i32
    return %c0_i32, %c0_i32_0 : i32, i32
  }
  func.func @transform_4(%arg0: i32) -> (i32, i32) {
    %c0_i32 = arith.constant 0 : i32
    %c0_i32_0 = arith.constant 0 : i32
    %c0_i32_1 = arith.constant 0 : i32
    return %c0_i32, %c0_i32_0 : i32, i32
  }
  func.func @transform_5(%arg0: i32) -> (i32, i32) {
    %c0_i32 = arith.constant 0 : i32
    %c0_i32_0 = arith.constant 0 : i32
    %c0_i32_1 = arith.constant 0 : i32
    return %c0_i32, %c0_i32_0 : i32, i32
  }
  func.func @transform_6(%arg0: i32) -> (i32, i32) {
    %c0_i32 = arith.constant 0 : i32
    %c0_i32_0 = arith.constant 0 : i32
    %c0_i32_1 = arith.constant 0 : i32
    return %c0_i32, %c0_i32_0 : i32, i32
  }
  func.func @transform_7(%arg0: i32) -> (i32, i32) {
    %c0_i32 = arith.constant 0 : i32
    %c0_i32_0 = arith.constant 0 : i32
    %c0_i32_1 = arith.constant 0 : i32
    return %c0_i32, %c0_i32_0 : i32, i32
  }
  func.func @transform_8(%arg0: i32) -> (i32, i32) {
    %c0_i32 = arith.constant 0 : i32
    %c0_i32_0 = arith.constant 0 : i32
    %c0_i32_1 = arith.constant 0 : i32
    return %c0_i32, %c0_i32_0 : i32, i32
  }
  func.func @transform_9(%arg0: i32) -> (i32, i32) {
    %c0_i32 = arith.constant 0 : i32
    %c0_i32_0 = arith.constant 0 : i32
    %c0_i32_1 = arith.constant 0 : i32
    return %c0_i32, %c0_i32_0 : i32, i32
  }
  func.func @transform_10(%arg0: i32) -> (i32, i32) {
    %c0_i32 = arith.constant 0 : i32
    %c0_i32_0 = arith.constant 0 : i32
    %c0_i32_1 = arith.constant 0 : i32
    return %c0_i32, %c0_i32_0 : i32, i32
  }
  func.func @transform_11(%arg0: i32) -> (i32, i32) {
    %c0_i32 = arith.constant 0 : i32
    %c0_i32_0 = arith.constant 0 : i32
    return %arg0, %c0_i32 : i32, i32
  }
}

</mosaic_0001>

<llo_original>
// kernel: tpu_custom_call.1
$region0: #{tpu_custom_call.1}
  #allocation0 [shape = 'u32[]', space=smem, size = 0x4, offset = 0x4, fixed_abs, tag = 'smem constant byte address 0x4 - core index']
  #allocation1 [shape = 'u32[144,128]{1,0:T(1,128)}', space=vmem, size = 0x12000, scoped, tag = 'internal scratch']
  %s0 = inlined_call_operand.vmem [shape: f32[128,32], index: 0, kind: input, shape index: {}]
  %s1 = inlined_call_operand.vmem [shape: f32[32,32], index: 1, kind: input, shape index: {}]
  %s2 = inlined_call_operand.vmem [shape: f32[1,32], index: 2, kind: input, shape index: {}]
  %s3 = inlined_call_operand.vmem [shape: f32[32,512], index: 3, kind: input, shape index: {}]
  %s4 = inlined_call_operand.vmem [shape: f32[1,512], index: 4, kind: input, shape index: {}]
  %s5 = inlined_call_operand.vmem [shape: f32[1,512], index: 5, kind: input, shape index: {}]
  %s6 = inlined_call_operand.vmem [shape: f32[128,8], index: 6, kind: input, shape index: {}]
  %s7 = inlined_call_operand.vmem [shape: f32[8,8], index: 7, kind: input, shape index: {}]
  %s8 = inlined_call_operand.vmem [shape: f32[1,8], index: 8, kind: input, shape index: {}]
  %s9 = inlined_call_operand.vmem [shape: f32[8,32], index: 9, kind: input, shape index: {}]
  %s10 = inlined_call_operand.vmem [shape: f32[1,32], index: 10, kind: input, shape index: {}]
  %s11 = inlined_call_operand.vmem [shape: f32[128,32], index: 11, kind: output, shape index: {}]
  %s12 = sld [smem:[#allocation0]]
  $region54: #{tpu_custom_call.1} parent=0
    _
  %s14 = ssub.s32 1, %s12
  %s15 = scalar_select 0, %s14, %s12
  // Predicated region
  $region2: #{tpu_custom_call.1} parent=0 // pred_check
    _
  $region3: #{tpu_custom_call.1} parent=0 // pred_check_branch
    %17 = sbr.rel (0) target = $region5
  $region4: #{tpu_custom_call.1} parent=0 // pred_region
    _
  $region5: #{tpu_custom_call.1} parent=0 // pred_fallthru
    _
  // Predicated region
  $region6: #{tpu_custom_call.1} parent=0 // pred_check
    _
  $region7: #{tpu_custom_call.1} parent=0 // pred_check_branch
    %19 = sbr.rel (0) target = $region9
  $region8: #{tpu_custom_call.1} parent=0 // pred_region
    _
  $region9: #{tpu_custom_call.1} parent=0 // pred_fallthru
    _
  // Predicated region
  $region10: #{tpu_custom_call.1} parent=0 // pred_check
    _
  $region11: #{tpu_custom_call.1} parent=0 // pred_check_branch
    %21 = sbr.rel (0) target = $region13
  $region12: #{tpu_custom_call.1} parent=0 // pred_region
    _
  $region13: #{tpu_custom_call.1} parent=0 // pred_fallthru
    _
  // Predicated region
  $region14: #{tpu_custom_call.1} parent=0 // pred_check
    _
  $region15: #{tpu_custom_call.1} parent=0 // pred_check_branch
    %23 = sbr.rel (0) target = $region17
  $region16: #{tpu_custom_call.1} parent=0 // pred_region
    _
  $region17: #{tpu_custom_call.1} parent=0 // pred_fallthru
    _
  // Predicated region
  $region18: #{tpu_custom_call.1} parent=0 // pred_check
    _
  $region19: #{tpu_custom_call.1} parent=0 // pred_check_branch
    %25 = sbr.rel (0) target = $region21
  $region20: #{tpu_custom_call.1} parent=0 // pred_region
    _
  $region21: #{tpu_custom_call.1} parent=0 // pred_fallthru
    _
  // Predicated region
  $region22: #{tpu_custom_call.1} parent=0 // pred_check
    _
  $region23: #{tpu_custom_call.1} parent=0 // pred_check_branch
    %27 = sbr.rel (0) target = $region25
  $region24: #{tpu_custom_call.1} parent=0 // pred_region
    _
  $region25: #{tpu_custom_call.1} parent=0 // pred_fallthru
    _
  // Predicated region
  $region26: #{tpu_custom_call.1} parent=0 // pred_check
    _
  $region27: #{tpu_custom_call.1} parent=0 // pred_check_branch
    %29 = sbr.rel (0) target = $region29
  $region28: #{tpu_custom_call.1} parent=0 // pred_region
    _
  $region29: #{tpu_custom_call.1} parent=0 // pred_fallthru
    _
  // Predicated region
  $region30: #{tpu_custom_call.1} parent=0 // pred_check
    _
  $region31: #{tpu_custom_call.1} parent=0 // pred_check_branch
    %31 = sbr.rel (0) target = $region33
  $region32: #{tpu_custom_call.1} parent=0 // pred_region
    _
  $region33: #{tpu_custom_call.1} parent=0 // pred_fallthru
    _
  // Predicated region
  $region34: #{tpu_custom_call.1} parent=0 // pred_check
    _
  $region35: #{tpu_custom_call.1} parent=0 // pred_check_branch
    %33 = sbr.rel (0) target = $region37
  $region36: #{tpu_custom_call.1} parent=0 // pred_region
    _
  $region37: #{tpu_custom_call.1} parent=0 // pred_fallthru
    _
  // Predicated region
  $region38: #{tpu_custom_call.1} parent=0 // pred_check
    _
  $region39: #{tpu_custom_call.1} parent=0 // pred_check_branch
    %35 = sbr.rel (0) target = $region41
  $region40: #{tpu_custom_call.1} parent=0 // pred_region
    _
  $region41: #{tpu_custom_call.1} parent=0 // pred_fallthru
    _
  // Predicated region
  $region42: #{tpu_custom_call.1} parent=0 // pred_check
    _
  $region43: #{tpu_custom_call.1} parent=0 // pred_check_branch
    %37 = sbr.rel (0) target = $region45
  $region44: #{tpu_custom_call.1} parent=0 // pred_region
    _
  $region45: #{tpu_custom_call.1} parent=0 // pred_fallthru
    _
  %v38 = vld [vmem:[%s0] sm:$0xff]
  %v39 = vld [vmem:[%s0 + $0x8] sm:$0xff]
  %v40 = vld [vmem:[%s0 + $0x10] sm:$0xff]
  %v41 = vld [vmem:[%s0 + $0x18] sm:$0xff]
  %v42 = vld [vmem:[%s0 + $0x20] sm:$0xff]
  %v43 = vld [vmem:[%s0 + $0x28] sm:$0xff]
  %v44 = vld [vmem:[%s0 + $0x30] sm:$0xff]
  %v45 = vld [vmem:[%s0 + $0x38] sm:$0xff]
  %v46 = vld [vmem:[%s0 + $0x40] sm:$0xff]
  %v47 = vld [vmem:[%s0 + $0x48] sm:$0xff]
  %v48 = vld [vmem:[%s0 + $0x50] sm:$0xff]
  %v49 = vld [vmem:[%s0 + $0x58] sm:$0xff]
  %v50 = vld [vmem:[%s0 + $0x60] sm:$0xff]
  %v51 = vld [vmem:[%s0 + $0x68] sm:$0xff]
  %v52 = vld [vmem:[%s0 + $0x70] sm:$0xff]
  %v53 = vld [vmem:[%s0 + $0x78] sm:$0xff]
  %v54 = vld [vmem:[%s1] sm:$0xff]
  %v55 = vld [vmem:[%s1 + $0x8] sm:$0xff]
  %v56 = vld [vmem:[%s1 + $0x10] sm:$0xff]
  %v57 = vld [vmem:[%s1 + $0x18] sm:$0xff]
  %v58 = vld [vmem:[%s2] sm:$0x1]
  %v60 = vlaneseq
  %v61 = vshrl.u32 %v60, 7
  %v62 = vsub.s32 0, %v61
  %v63 = vrot.slane %v58, %v62
  %vm65 = vcmask 261120
  %v67 = vsel %vm65, %v38, 0
  %v70 = vsel %vm65, %v39, 0
  %v73 = vsel %vm65, %v40, 0
  %v76 = vsel %vm65, %v41, 0
  %v79 = vsel %vm65, %v42, 0
  %v82 = vsel %vm65, %v43, 0
  %v85 = vsel %vm65, %v44, 0
  %v88 = vsel %vm65, %v45, 0
  %v91 = vsel %vm65, %v46, 0
  %v94 = vsel %vm65, %v47, 0
  %v97 = vsel %vm65, %v48, 0
  %v100 = vsel %vm65, %v49, 0
  %v103 = vsel %vm65, %v50, 0
  %v106 = vsel %vm65, %v51, 0
  %v109 = vsel %vm65, %v52, 0
  %v112 = vsel %vm65, %v53, 0
  %114 = vmatprep.subr.mxu0 0.0
  %115 = vmatpush1.msra.mxu0 %v54
  %116 = vmatprep.subr.mxu0 0.0
  %117 = vmatpush1.msra.mxu0 %v55
  %118 = vmatprep.subr.mxu0 0.0
  %119 = vmatpush1.msra.mxu0 %v56
  %120 = vmatprep.subr.mxu0 0.0
  %121 = vmatpush1.msra.mxu0 %v57
  %122 = vmatprep.subr.mxu0 0.0
  %123 = vmatpush1.msra.mxu0 0.0
  %124 = vmatprep.subr.mxu0 0.0
  %125 = vmatpush1.msra.mxu0 0.0
  %126 = vmatprep.subr.mxu0 0.0
  %127 = vmatpush1.msra.mxu0 0.0
  %128 = vmatprep.subr.mxu0 0.0
  %129 = vmatpush1.msra.mxu0 0.0
  %130 = vmatprep.subr.mxu0 0.0
  %131 = vmatpush1.msra.mxu0 0.0
  %132 = vmatprep.subr.mxu0 0.0
  %133 = vmatpush1.msra.mxu0 0.0
  %134 = vmatprep.subr.mxu0 0.0
  %135 = vmatpush1.msra.mxu0 0.0
  %136 = vmatprep.subr.mxu0 0.0
  %137 = vmatpush1.msra.mxu0 0.0
  %138 = vmatprep.subr.mxu0 0.0
  %139 = vmatpush1.msra.mxu0 0.0
  %140 = vmatprep.subr.mxu0 0.0
  %141 = vmatpush1.msra.mxu0 0.0
  %142 = vmatprep.subr.mxu0 0.0
  %143 = vmatpush1.msra.mxu0 0.0
  %144 = vmatprep.subr.mxu0 0.0
  %145 = vmatpush1.msra.mxu0 0.0
  %146 = vmatprep.subr.mxu0 0.0
  %147 = vmatpush1.msra.mxu0 0.0
  %148 = vmatprep.subr.mxu0 0.0
  %149 = vmatpush1.msra.mxu0 0.0
  %150 = vmatprep.subr.mxu0 0.0
  %151 = vmatpush1.msra.mxu0 0.0
  %152 = vmatprep.subr.mxu0 0.0
  %153 = vmatpush1.msra.mxu0 0.0
  %154 = vmatprep.subr.mxu0 0.0
  %155 = vmatpush1.msra.mxu0 0.0
  %156 = vmatprep.subr.mxu0 0.0
  %157 = vmatpush1.msra.mxu0 0.0
  %158 = vmatprep.subr.mxu0 0.0
  %159 = vmatpush1.msra.mxu0 0.0
  %160 = vmatprep.subr.mxu0 0.0
  %161 = vmatpush1.msra.mxu0 0.0
  %162 = vmatprep.subr.mxu0 0.0
  %163 = vmatpush1.msra.mxu0 0.0
  %164 = vmatprep.subr.mxu0 0.0
  %165 = vmatpush1.msra.mxu0 0.0
  %166 = vmatprep.subr.mxu0 0.0
  %167 = vmatpush1.msra.mxu0 0.0
  %168 = vmatprep.subr.mxu0 0.0
  %169 = vmatpush1.msra.mxu0 0.0
  %170 = vmatprep.subr.mxu0 0.0
  %171 = vmatpush1.msra.mxu0 0.0
  %172 = vmatprep.subr.mxu0 0.0
  %173 = vmatpush1.msra.mxu0 0.0
  %174 = vmatprep.subr.mxu0 0.0
  %175 = vmatpush1.msra.mxu0 0.0
  %176 = vmatprep.subr.mxu0 0.0
  %177 = vmatpush1.msra.mxu0 0.0
  %178 = vmatprep.mubr.f32.mxu0 0.0
  %179 = vmatmul.mubr.f32.gmra.mrb[0].mxu0 %v67
  %v180 = vpop.f32.mrb[0].mxu0
  %v181 = vadd.f32 %v63, %v180
  %v182 = vpop.f32.mrb[0].mxu0
  %183 = vmatprep.mubr.f32.mxu0 0.0
  %184 = vmatmul.mubr.f32.gmra.mrb[0].mxu0 %v70
  %v185 = vpop.f32.mrb[0].mxu0
  %v186 = vadd.f32 %v63, %v185
  %v187 = vpop.f32.mrb[0].mxu0
  %188 = vmatprep.mubr.f32.mxu0 0.0
  %189 = vmatmul.mubr.f32.gmra.mrb[0].mxu0 %v73
  %v190 = vpop.f32.mrb[0].mxu0
  %v191 = vadd.f32 %v63, %v190
  %v192 = vpop.f32.mrb[0].mxu0
  %193 = vmatprep.mubr.f32.mxu0 0.0
  %194 = vmatmul.mubr.f32.gmra.mrb[0].mxu0 %v76
  %v195 = vpop.f32.mrb[0].mxu0
  %v196 = vadd.f32 %v63, %v195
  %v197 = vpop.f32.mrb[0].mxu0
  %198 = vmatprep.mubr.f32.mxu0 0.0
  %199 = vmatmul.mubr.f32.gmra.mrb[0].mxu0 %v79
  %v200 = vpop.f32.mrb[0].mxu0
  %v201 = vadd.f32 %v63, %v200
  %v202 = vpop.f32.mrb[0].mxu0
  %203 = vmatprep.mubr.f32.mxu0 0.0
  %204 = vmatmul.mubr.f32.gmra.mrb[0].mxu0 %v82
  %v205 = vpop.f32.mrb[0].mxu0
  %v206 = vadd.f32 %v63, %v205
  %v207 = vpop.f32.mrb[0].mxu0
  %208 = vmatprep.mubr.f32.mxu0 0.0
  %209 = vmatmul.mubr.f32.gmra.mrb[0].mxu0 %v85
  %v210 = vpop.f32.mrb[0].mxu0
  %v211 = vadd.f32 %v63, %v210
  %v212 = vpop.f32.mrb[0].mxu0
  %213 = vmatprep.mubr.f32.mxu0 0.0
  %214 = vmatmul.mubr.f32.gmra.mrb[0].mxu0 %v88
  %v215 = vpop.f32.mrb[0].mxu0
  %v216 = vadd.f32 %v63, %v215
  %v217 = vpop.f32.mrb[0].mxu0
  %218 = vmatprep.mubr.f32.mxu0 0.0
  %219 = vmatmul.mubr.f32.gmra.mrb[0].mxu0 %v91
  %v220 = vpop.f32.mrb[0].mxu0
  %v221 = vadd.f32 %v63, %v220
  %v222 = vpop.f32.mrb[0].mxu0
  %223 = vmatprep.mubr.f32.mxu0 0.0
  %224 = vmatmul.mubr.f32.gmra.mrb[0].mxu0 %v94
  %v225 = vpop.f32.mrb[0].mxu0
  %v226 = vadd.f32 %v63, %v225
  %v227 = vpop.f32.mrb[0].mxu0
  %228 = vmatprep.mubr.f32.mxu0 0.0
  %229 = vmatmul.mubr.f32.gmra.mrb[0].mxu0 %v97
  %v230 = vpop.f32.mrb[0].mxu0
  %v231 = vadd.f32 %v63, %v230
  %v232 = vpop.f32.mrb[0].mxu0
  %233 = vmatprep.mubr.f32.mxu0 0.0
  %234 = vmatmul.mubr.f32.gmra.mrb[0].mxu0 %v100
  %v235 = vpop.f32.mrb[0].mxu0
  %v236 = vadd.f32 %v63, %v235
  %v237 = vpop.f32.mrb[0].mxu0
  %238 = vmatprep.mubr.f32.mxu0 0.0
  %239 = vmatmul.mubr.f32.gmra.mrb[0].mxu0 %v103
  %v240 = vpop.f32.mrb[0].mxu0
  %v241 = vadd.f32 %v63, %v240
  %v242 = vpop.f32.mrb[0].mxu0
  %243 = vmatprep.mubr.f32.mxu0 0.0
  %244 = vmatmul.mubr.f32.gmra.mrb[0].mxu0 %v106
  %v245 = vpop.f32.mrb[0].mxu0
  %v246 = vadd.f32 %v63, %v245
  %v247 = vpop.f32.mrb[0].mxu0
  %248 = vmatprep.mubr.f32.mxu0 0.0
  %249 = vmatmul.mubr.f32.gmra.mrb[0].mxu0 %v109
  %v250 = vpop.f32.mrb[0].mxu0
  %v251 = vadd.f32 %v63, %v250
  %v252 = vpop.f32.mrb[0].mxu0
  %253 = vmatprep.mubr.f32.mxu0 0.0
  %254 = vmatmul.mubr.f32.gmra.mrb[0].mxu0 %v112
  %v255 = vpop.f32.mrb[0].mxu0
  %v256 = vadd.f32 %v63, %v255
  %v257 = vpop.f32.mrb[0].mxu0
  %258 = vdwg.mxu0
  %v259 = vxor.u32 %v181, 2147483648
  %v260 = vxor.u32 %v186, 2147483648
  %v261 = vxor.u32 %v191, 2147483648
  %v262 = vxor.u32 %v196, 2147483648
  %v263 = vxor.u32 %v201, 2147483648
  %v264 = vxor.u32 %v206, 2147483648
  %v265 = vxor.u32 %v211, 2147483648
  %v266 = vxor.u32 %v216, 2147483648
  %v267 = vxor.u32 %v221, 2147483648
  %v268 = vxor.u32 %v226, 2147483648
  %v269 = vxor.u32 %v231, 2147483648
  %v270 = vxor.u32 %v236, 2147483648
  %v271 = vxor.u32 %v241, 2147483648
  %v272 = vxor.u32 %v246, 2147483648
  %v273 = vxor.u32 %v251, 2147483648
  %v274 = vxor.u32 %v256, 2147483648
  %v275 = vmul.f32 %v259, 1.442695
  %v276 = vpow.pop %v275
  %v277 = vmul.f32 %v260, 1.442695
  %v278 = vpow.pop %v277
  %v279 = vmul.f32 %v261, 1.442695
  %v280 = vpow.pop %v279
  %v281 = vmul.f32 %v262, 1.442695
  %v282 = vpow.pop %v281
  %v283 = vmul.f32 %v263, 1.442695
  %v284 = vpow.pop %v283
  %v285 = vmul.f32 %v264, 1.442695
  %v286 = vpow.pop %v285
  %v287 = vmul.f32 %v265, 1.442695
  %v288 = vpow.pop %v287
  %v289 = vmul.f32 %v266, 1.442695
  %v290 = vpow.pop %v289
  %v291 = vmul.f32 %v267, 1.442695
  %v292 = vpow.pop %v291
  %v293 = vmul.f32 %v268, 1.442695
  %v294 = vpow.pop %v293
  %v295 = vmul.f32 %v269, 1.442695
  %v296 = vpow.pop %v295
  %v297 = vmul.f32 %v270, 1.442695
  %v298 = vpow.pop %v297
  %v299 = vmul.f32 %v271, 1.442695
  %v300 = vpow.pop %v299
  %v301 = vmul.f32 %v272, 1.442695
  %v302 = vpow.pop %v301
  %v303 = vmul.f32 %v273, 1.442695
  %v304 = vpow.pop %v303
  %v305 = vmul.f32 %v274, 1.442695
  %v306 = vpow.pop %v305
  %v307 = vadd.f32 %v276, 1.0
  %v308 = vadd.f32 %v278, 1.0
  %v309 = vadd.f32 %v280, 1.0
  %v310 = vadd.f32 %v282, 1.0
  %v311 = vadd.f32 %v284, 1.0
  %v312 = vadd.f32 %v286, 1.0
  %v313 = vadd.f32 %v288, 1.0
  %v314 = vadd.f32 %v290, 1.0
  %v315 = vadd.f32 %v292, 1.0
  %v316 = vadd.f32 %v294, 1.0
  %v317 = vadd.f32 %v296, 1.0
  %v318 = vadd.f32 %v298, 1.0
  %v319 = vadd.f32 %v300, 1.0
  %v320 = vadd.f32 %v302, 1.0
  %v321 = vadd.f32 %v304, 1.0
  %v322 = vadd.f32 %v306, 1.0
  %v323 = vrcp.pop %v307
  %v324 = vmul.f32 1.0, %v323
  %v325 = vrcp.pop %v308
  %v326 = vmul.f32 1.0, %v325
  %v327 = vrcp.pop %v309
  %v328 = vmul.f32 1.0, %v327
  %v329 = vrcp.pop %v310
  %v330 = vmul.f32 1.0, %v329
  %v331 = vrcp.pop %v311
  %v332 = vmul.f32 1.0, %v331
  %v333 = vrcp.pop %v312
  %v334 = vmul.f32 1.0, %v333
  %v335 = vrcp.pop %v313
  %v336 = vmul.f32 1.0, %v335
  %v337 = vrcp.pop %v314
  %v338 = vmul.f32 1.0, %v337
  %v339 = vrcp.pop %v315
  %v340 = vmul.f32 1.0, %v339
  %v341 = vrcp.pop %v316
  %v342 = vmul.f32 1.0, %v341
  %v343 = vrcp.pop %v317
  %v344 = vmul.f32 1.0, %v343
  %v345 = vrcp.pop %v318
  %v346 = vmul.f32 1.0, %v345
  %v347 = vrcp.pop %v319
  %v348 = vmul.f32 1.0, %v347
  %v349 = vrcp.pop %v320
  %v350 = vmul.f32 1.0, %v349
  %v351 = vrcp.pop %v321
  %v352 = vmul.f32 1.0, %v351
  %v353 = vrcp.pop %v322
  %v354 = vmul.f32 1.0, %v353
  %v355 = vld [vmem:[%s3] sm:$0xff]
  %v356 = vld [vmem:[%s3 + $0x8] sm:$0xff]
  %v357 = vld [vmem:[%s3 + $0x10] sm:$0xff]
  %v358 = vld [vmem:[%s3 + $0x18] sm:$0xff]
  %v359 = vld [vmem:[%s3 + $0x20] sm:$0xff]
  %v360 = vld [vmem:[%s3 + $0x28] sm:$0xff]
  %v361 = vld [vmem:[%s3 + $0x30] sm:$0xff]
  %v362 = vld [vmem:[%s3 + $0x38] sm:$0xff]
  %v363 = vld [vmem:[%s3 + $0x40] sm:$0xff]
  %v364 = vld [vmem:[%s3 + $0x48] sm:$0xff]
  %v365 = vld [vmem:[%s3 + $0x50] sm:$0xff]
  %v366 = vld [vmem:[%s3 + $0x58] sm:$0xff]
  %v367 = vld [vmem:[%s3 + $0x60] sm:$0xff]
  %v368 = vld [vmem:[%s3 + $0x68] sm:$0xff]
  %v369 = vld [vmem:[%s3 + $0x70] sm:$0xff]
  %v370 = vld [vmem:[%s3 + $0x78] sm:$0xff]
  %v372 = vsel %vm65, %v324, 0
  %v375 = vsel %vm65, %v326, 0
  %v378 = vsel %vm65, %v328, 0
  %v381 = vsel %vm65, %v330, 0
  %v384 = vsel %vm65, %v332, 0
  %v387 = vsel %vm65, %v334, 0
  %v390 = vsel %vm65, %v336, 0
  %v393 = vsel %vm65, %v338, 0
  %v396 = vsel %vm65, %v340, 0
  %v399 = vsel %vm65, %v342, 0
  %v402 = vsel %vm65, %v344, 0
  %v405 = vsel %vm65, %v346, 0
  %v408 = vsel %vm65, %v348, 0
  %v411 = vsel %vm65, %v350, 0
  %v414 = vsel %vm65, %v352, 0
  %v417 = vsel %vm65, %v354, 0
  %419 = vmatprep.subr.mxu0 %v356
  %420 = vmatpush1.msra.mxu0 %v355
  %421 = vmatprep.subr.mxu0 %v360
  %422 = vmatpush1.msra.mxu0 %v359
  %423 = vmatprep.subr.mxu0 %v364
  %424 = vmatpush1.msra.mxu0 %v363
  %425 = vmatprep.subr.mxu0 %v368
  %426 = vmatpush1.msra.mxu0 %v367
  %427 = vmatprep.subr.mxu0 0.0
  %428 = vmatpush1.msra.mxu0 0.0
  %429 = vmatprep.subr.mxu0 0.0
  %430 = vmatpush1.msra.mxu0 0.0
  %431 = vmatprep.subr.mxu0 0.0
  %432 = vmatpush1.msra.mxu0 0.0
  %433 = vmatprep.subr.mxu0 0.0
  %434 = vmatpush1.msra.mxu0 0.0
  %435 = vmatprep.subr.mxu0 0.0
  %436 = vmatpush1.msra.mxu0 0.0
  %437 = vmatprep.subr.mxu0 0.0
  %438 = vmatpush1.msra.mxu0 0.0
  %439 = vmatprep.subr.mxu0 0.0
  %440 = vmatpush1.msra.mxu0 0.0
  %441 = vmatprep.subr.mxu0 0.0
  %442 = vmatpush1.msra.mxu0 0.0
  %443 = vmatprep.subr.mxu0 0.0
  %444 = vmatpush1.msra.mxu0 0.0
  %445 = vmatprep.subr.mxu0 0.0
  %446 = vmatpush1.msra.mxu0 0.0
  %447 = vmatprep.subr.mxu0 0.0
  %448 = vmatpush1.msra.mxu0 0.0
  %449 = vmatprep.subr.mxu0 0.0
  %450 = vmatpush1.msra.mxu0 0.0
  %451 = vmatprep.subr.mxu0 0.0
  %452 = vmatpush1.msra.mxu0 0.0
  %453 = vmatprep.subr.mxu0 0.0
  %454 = vmatpush1.msra.mxu0 0.0
  %455 = vmatprep.subr.mxu0 0.0
  %456 = vmatpush1.msra.mxu0 0.0
  %457 = vmatprep.subr.mxu0 0.0
  %458 = vmatpush1.msra.mxu0 0.0
  %459 = vmatprep.subr.mxu0 0.0
  %460 = vmatpush1.msra.mxu0 0.0
  %461 = vmatprep.subr.mxu0 0.0
  %462 = vmatpush1.msra.mxu0 0.0
  %463 = vmatprep.subr.mxu0 0.0
  %464 = vmatpush1.msra.mxu0 0.0
  %465 = vmatprep.subr.mxu0 0.0
  %466 = vmatpush1.msra.mxu0 0.0
  %467 = vmatprep.subr.mxu0 0.0
  %468 = vmatpush1.msra.mxu0 0.0
  %469 = vmatprep.subr.mxu0 0.0
  %470 = vmatpush1.msra.mxu0 0.0
  %471 = vmatprep.subr.mxu0 0.0
  %472 = vmatpush1.msra.mxu0 0.0
  %473 = vmatprep.subr.mxu0 0.0
  %474 = vmatpush1.msra.mxu0 0.0
  %475 = vmatprep.subr.mxu0 0.0
  %476 = vmatpush1.msra.mxu0 0.0
  %477 = vmatprep.subr.mxu0 0.0
  %478 = vmatpush1.msra.mxu0 0.0
  %479 = vmatprep.subr.mxu0 0.0
  %480 = vmatpush1.msra.mxu0 0.0
  %481 = vmatprep.subr.mxu0 0.0
  %482 = vmatpush1.msra.mxu0 0.0
  %483 = vmatprep.mubr.f32.mxu0 0.0
  %484 = vmatmul.mubr.f32.gmra.mrb[0].mxu0 %v372
  %v485 = vpop.f32.mrb[0].mxu0
  %v486 = vadd.f32 0.0, %v485
  %v487 = vpop.f32.mrb[0].mxu0
  %v488 = vadd.f32 0.0, %v487
  %489 = vmatprep.mubr.f32.mxu0 0.0
  %490 = vmatmul.mubr.f32.gmra.mrb[0].mxu0 %v375
  %v491 = vpop.f32.mrb[0].mxu0
  %v492 = vadd.f32 0.0, %v491
  %v493 = vpop.f32.mrb[0].mxu0
  %v494 = vadd.f32 0.0, %v493
  %495 = vmatprep.mubr.f32.mxu0 0.0
  %496 = vmatmul.mubr.f32.gmra.mrb[0].mxu0 %v378
  %v497 = vpop.f32.mrb[0].mxu0
  %v498 = vadd.f32 0.0, %v497
  %v499 = vpop.f32.mrb[0].mxu0
  %v500 = vadd.f32 0.0, %v499
  %501 = vmatprep.mubr.f32.mxu0 0.0
  %502 = vmatmul.mubr.f32.gmra.mrb[0].mxu0 %v381
  %v503 = vpop.f32.mrb[0].mxu0
  %v504 = vadd.f32 0.0, %v503
  %v505 = vpop.f32.mrb[0].mxu0
  %v506 = vadd.f32 0.0, %v505
  %507 = vmatprep.mubr.f32.mxu0 0.0
  %508 = vmatmul.mubr.f32.gmra.mrb[0].mxu0 %v384
  %v509 = vpop.f32.mrb[0].mxu0
  %v510 = vadd.f32 0.0, %v509
  %v511 = vpop.f32.mrb[0].mxu0
  %v512 = vadd.f32 0.0, %v511
  %513 = vmatprep.mubr.f32.mxu0 0.0
  %514 = vmatmul.mubr.f32.gmra.mrb[0].mxu0 %v387
  %v515 = vpop.f32.mrb[0].mxu0
  %v516 = vadd.f32 0.0, %v515
  %v517 = vpop.f32.mrb[0].mxu0
  %v518 = vadd.f32 0.0, %v517
  %519 = vmatprep.mubr.f32.mxu0 0.0
  %520 = vmatmul.mubr.f32.gmra.mrb[0].mxu0 %v390
  %v521 = vpop.f32.mrb[0].mxu0
  %v522 = vadd.f32 0.0, %v521
  %v523 = vpop.f32.mrb[0].mxu0
  %v524 = vadd.f32 0.0, %v523
  %525 = vmatprep.mubr.f32.mxu0 0.0
  %526 = vmatmul.mubr.f32.gmra.mrb[0].mxu0 %v393
  %v527 = vpop.f32.mrb[0].mxu0
  %v528 = vadd.f32 0.0, %v527
  %v529 = vpop.f32.mrb[0].mxu0
  %v530 = vadd.f32 0.0, %v529
  %531 = vmatprep.mubr.f32.mxu0 0.0
  %532 = vmatmul.mubr.f32.gmra.mrb[0].mxu0 %v396
  %v533 = vpop.f32.mrb[0].mxu0
  %v534 = vadd.f32 0.0, %v533
  %v535 = vpop.f32.mrb[0].mxu0
  %v536 = vadd.f32 0.0, %v535
  %537 = vmatprep.mubr.f32.mxu0 0.0
  %538 = vmatmul.mubr.f32.gmra.mrb[0].mxu0 %v399
  %v539 = vpop.f32.mrb[0].mxu0
  %v540 = vadd.f32 0.0, %v539
  %v541 = vpop.f32.mrb[0].mxu0
  %v542 = vadd.f32 0.0, %v541
  %543 = vmatprep.mubr.f32.mxu0 0.0
  %544 = vmatmul.mubr.f32.gmra.mrb[0].mxu0 %v402
  %v545 = vpop.f32.mrb[0].mxu0
  %v546 = vadd.f32 0.0, %v545
  %v547 = vpop.f32.mrb[0].mxu0
  %v548 = vadd.f32 0.0, %v547
  %549 = vmatprep.mubr.f32.mxu0 0.0
  %550 = vmatmul.mubr.f32.gmra.mrb[0].mxu0 %v405
  %v551 = vpop.f32.mrb[0].mxu0
  %v552 = vadd.f32 0.0, %v551
  %v553 = vpop.f32.mrb[0].mxu0
  %v554 = vadd.f32 0.0, %v553
  %555 = vmatprep.mubr.f32.mxu0 0.0
  %556 = vmatmul.mubr.f32.gmra.mrb[0].mxu0 %v408
  %v557 = vpop.f32.mrb[0].mxu0
  %v558 = vadd.f32 0.0, %v557
  %v559 = vpop.f32.mrb[0].mxu0
  %v560 = vadd.f32 0.0, %v559
  %561 = vmatprep.mubr.f32.mxu0 0.0
  %562 = vmatmul.mubr.f32.gmra.mrb[0].mxu0 %v411
  %v563 = vpop.f32.mrb[0].mxu0
  %v564 = vadd.f32 0.0, %v563
  %v565 = vpop.f32.mrb[0].mxu0
  %v566 = vadd.f32 0.0, %v565
  %567 = vmatprep.mubr.f32.mxu0 0.0
  %568 = vmatmul.mubr.f32.gmra.mrb[0].mxu0 %v414
  %v569 = vpop.f32.mrb[0].mxu0
  %v570 = vadd.f32 0.0, %v569
  %v571 = vpop.f32.mrb[0].mxu0
  %v572 = vadd.f32 0.0, %v571
  %573 = vmatprep.mubr.f32.mxu0 0.0
  %574 = vmatmul.mubr.f32.gmra.mrb[0].mxu0 %v417
  %v575 = vpop.f32.mrb[0].mxu0
  %v576 = vadd.f32 0.0, %v575
  %v577 = vpop.f32.mrb[0].mxu0
  %v578 = vadd.f32 0.0, %v577
  %579 = vdwg.mxu0
  %580 = vmatprep.subr.mxu0 %v358
  %581 = vmatpush1.msra.mxu0 %v357
  %582 = vmatprep.subr.mxu0 %v362
  %583 = vmatpush1.msra.mxu0 %v361
  %584 = vmatprep.subr.mxu0 %v366
  %585 = vmatpush1.msra.mxu0 %v365
  %586 = vmatprep.subr.mxu0 %v370
  %587 = vmatpush1.msra.mxu0 %v369
  %588 = vmatprep.subr.mxu0 0.0
  %589 = vmatpush1.msra.mxu0 0.0
  %590 = vmatprep.subr.mxu0 0.0
  %591 = vmatpush1.msra.mxu0 0.0
  %592 = vmatprep.subr.mxu0 0.0
  %593 = vmatpush1.msra.mxu0 0.0
  %594 = vmatprep.subr.mxu0 0.0
  %595 = vmatpush1.msra.mxu0 0.0
  %596 = vmatprep.subr.mxu0 0.0
  %597 = vmatpush1.msra.mxu0 0.0
  %598 = vmatprep.subr.mxu0 0.0
  %599 = vmatpush1.msra.mxu0 0.0
  %600 = vmatprep.subr.mxu0 0.0
  %601 = vmatpush1.msra.mxu0 0.0
  %602 = vmatprep.subr.mxu0 0.0
  %603 = vmatpush1.msra.mxu0 0.0
  %604 = vmatprep.subr.mxu0 0.0
  %605 = vmatpush1.msra.mxu0 0.0
  %606 = vmatprep.subr.mxu0 0.0
  %607 = vmatpush1.msra.mxu0 0.0
  %608 = vmatprep.subr.mxu0 0.0
  %609 = vmatpush1.msra.mxu0 0.0
  %610 = vmatprep.subr.mxu0 0.0
  %611 = vmatpush1.msra.mxu0 0.0
  %612 = vmatprep.subr.mxu0 0.0
  %613 = vmatpush1.msra.mxu0 0.0
  %614 = vmatprep.subr.mxu0 0.0
  %615 = vmatpush1.msra.mxu0 0.0
  %616 = vmatprep.subr.mxu0 0.0
  %617 = vmatpush1.msra.mxu0 0.0
  %618 = vmatprep.subr.mxu0 0.0
  %619 = vmatpush1.msra.mxu0 0.0
  %620 = vmatprep.subr.mxu0 0.0
  %621 = vmatpush1.msra.mxu0 0.0
  %622 = vmatprep.subr.mxu0 0.0
  %623 = vmatpush1.msra.mxu0 0.0
  %624 = vmatprep.subr.mxu0 0.0
  %625 = vmatpush1.msra.mxu0 0.0
  %626 = vmatprep.subr.mxu0 0.0
  %627 = vmatpush1.msra.mxu0 0.0
  %628 = vmatprep.subr.mxu0 0.0
  %629 = vmatpush1.msra.mxu0 0.0
  %630 = vmatprep.subr.mxu0 0.0
  %631 = vmatpush1.msra.mxu0 0.0
  %632 = vmatprep.subr.mxu0 0.0
  %633 = vmatpush1.msra.mxu0 0.0
  %634 = vmatprep.subr.mxu0 0.0
  %635 = vmatpush1.msra.mxu0 0.0
  %636 = vmatprep.subr.mxu0 0.0
  %637 = vmatpush1.msra.mxu0 0.0
  %638 = vmatprep.subr.mxu0 0.0
  %639 = vmatpush1.msra.mxu0 0.0
  %640 = vmatprep.subr.mxu0 0.0
  %641 = vmatpush1.msra.mxu0 0.0
  %642 = vmatprep.subr.mxu0 0.0
  %643 = vmatpush1.msra.mxu0 0.0
  %644 = vmatprep.mubr.f32.mxu0 0.0
  %645 = vmatmul.mubr.f32.gmra.mrb[0].mxu0 %v372
  %v646 = vpop.f32.mrb[0].mxu0
  %v647 = vadd.f32 0.0, %v646
  %v648 = vpop.f32.mrb[0].mxu0
  %v649 = vadd.f32 0.0, %v648
  %650 = vmatprep.mubr.f32.mxu0 0.0
  %651 = vmatmul.mubr.f32.gmra.mrb[0].mxu0 %v375
  %v652 = vpop.f32.mrb[0].mxu0
  %v653 = vadd.f32 0.0, %v652
  %v654 = vpop.f32.mrb[0].mxu0
  %v655 = vadd.f32 0.0, %v654
  %656 = vmatprep.mubr.f32.mxu0 0.0
  %657 = vmatmul.mubr.f32.gmra.mrb[0].mxu0 %v378
  %v658 = vpop.f32.mrb[0].mxu0
  %v659 = vadd.f32 0.0, %v658
  %v660 = vpop.f32.mrb[0].mxu0
  %v661 = vadd.f32 0.0, %v660
  %662 = vmatprep.mubr.f32.mxu0 0.0
  %663 = vmatmul.mubr.f32.gmra.mrb[0].mxu0 %v381
  %v664 = vpop.f32.mrb[0].mxu0
  %v665 = vadd.f32 0.0, %v664
  %v666 = vpop.f32.mrb[0].mxu0
  %v667 = vadd.f32 0.0, %v666
  %668 = vmatprep.mubr.f32.mxu0 0.0
  %669 = vmatmul.mubr.f32.gmra.mrb[0].mxu0 %v384
  %v670 = vpop.f32.mrb[0].mxu0
  %v671 = vadd.f32 0.0, %v670
  %v672 = vpop.f32.mrb[0].mxu0
  %v673 = vadd.f32 0.0, %v672
  %674 = vmatprep.mubr.f32.mxu0 0.0
  %675 = vmatmul.mubr.f32.gmra.mrb[0].mxu0 %v387
  %v676 = vpop.f32.mrb[0].mxu0
  %v677 = vadd.f32 0.0, %v676
  %v678 = vpop.f32.mrb[0].mxu0
  %v679 = vadd.f32 0.0, %v678
  %680 = vmatprep.mubr.f32.mxu0 0.0
  %681 = vmatmul.mubr.f32.gmra.mrb[0].mxu0 %v390
  %v682 = vpop.f32.mrb[0].mxu0
  %v683 = vadd.f32 0.0, %v682
  %v684 = vpop.f32.mrb[0].mxu0
  %v685 = vadd.f32 0.0, %v684
  %686 = vmatprep.mubr.f32.mxu0 0.0
  %687 = vmatmul.mubr.f32.gmra.mrb[0].mxu0 %v393
  %v688 = vpop.f32.mrb[0].mxu0
  %v689 = vadd.f32 0.0, %v688
  %v690 = vpop.f32.mrb[0].mxu0
  %v691 = vadd.f32 0.0, %v690
  %692 = vmatprep.mubr.f32.mxu0 0.0
  %693 = vmatmul.mubr.f32.gmra.mrb[0].mxu0 %v396
  %v694 = vpop.f32.mrb[0].mxu0
  %v695 = vadd.f32 0.0, %v694
  %v696 = vpop.f32.mrb[0].mxu0
  %v697 = vadd.f32 0.0, %v696
  %698 = vmatprep.mubr.f32.mxu0 0.0
  %699 = vmatmul.mubr.f32.gmra.mrb[0].mxu0 %v399
  %v700 = vpop.f32.mrb[0].mxu0
  %v701 = vadd.f32 0.0, %v700
  %v702 = vpop.f32.mrb[0].mxu0
  %v703 = vadd.f32 0.0, %v702
  %704 = vmatprep.mubr.f32.mxu0 0.0
  %705 = vmatmul.mubr.f32.gmra.mrb[0].mxu0 %v402
  %v706 = vpop.f32.mrb[0].mxu0
  %v707 = vadd.f32 0.0, %v706
  %v708 = vpop.f32.mrb[0].mxu0
  %v709 = vadd.f32 0.0, %v708
  %710 = vmatprep.mubr.f32.mxu0 0.0
  %711 = vmatmul.mubr.f32.gmra.mrb[0].mxu0 %v405
  %v712 = vpop.f32.mrb[0].mxu0
  %v713 = vadd.f32 0.0, %v712
  %v714 = vpop.f32.mrb[0].mxu0
  %v715 = vadd.f32 0.0, %v714
  %716 = vmatprep.mubr.f32.mxu0 0.0
  %717 = vmatmul.mubr.f32.gmra.mrb[0].mxu0 %v408
  %v718 = vpop.f32.mrb[0].mxu0
  %v719 = vadd.f32 0.0, %v718
  %v720 = vpop.f32.mrb[0].mxu0
  %v721 = vadd.f32 0.0, %v720
  %722 = vmatprep.mubr.f32.mxu0 0.0
  %723 = vmatmul.mubr.f32.gmra.mrb[0].mxu0 %v411
  %v724 = vpop.f32.mrb[0].mxu0
  %v725 = vadd.f32 0.0, %v724
  %v726 = vpop.f32.mrb[0].mxu0
  %v727 = vadd.f32 0.0, %v726
  %728 = vmatprep.mubr.f32.mxu0 0.0
  %729 = vmatmul.mubr.f32.gmra.mrb[0].mxu0 %v414
  %v730 = vpop.f32.mrb[0].mxu0
  %v731 = vadd.f32 0.0, %v730
  %v732 = vpop.f32.mrb[0].mxu0
  %v733 = vadd.f32 0.0, %v732
  %734 = vmatprep.mubr.f32.mxu0 0.0
  %735 = vmatmul.mubr.f32.gmra.mrb[0].mxu0 %v417
  %v736 = vpop.f32.mrb[0].mxu0
  %v737 = vadd.f32 0.0, %v736
  %v738 = vpop.f32.mrb[0].mxu0
  %v739 = vadd.f32 0.0, %v738
  %740 = vdwg.mxu0
  %v741 = vld [vmem:[%s5] sm:$0xf]
  %v742 = vld [vmem:[%s4] sm:$0xf]
  %v744 = vlaneseq
  %v745 = vshrl.u32 %v744, 7
  %v746 = vsub.s32 0, %v745
  %v747 = vrot.slane %v742, %v746
  %v748 = vlaneseq
  %v749 = vshrl.u32 %v748, 7
  %v750 = vsub.s32 1, %v749
  %v751 = vrot.slane %v742, %v750
  %v752 = vlaneseq
  %v753 = vshrl.u32 %v752, 7
  %v754 = vsub.s32 2, %v753
  %v755 = vrot.slane %v742, %v754
  %v756 = vlaneseq
  %v757 = vshrl.u32 %v756, 7
  %v758 = vsub.s32 3, %v757
  %v759 = vrot.slane %v742, %v758
  %v764 = vmul.f32 %v747, %v486
  %v765 = vmul.f32 %v751, %v488
  %v766 = vmul.f32 %v755, %v647
  %v767 = vmul.f32 %v759, %v649
  %v768 = vmul.f32 %v747, %v492
  %v769 = vmul.f32 %v751, %v494
  %v770 = vmul.f32 %v755, %v653
  %v771 = vmul.f32 %v759, %v655
  %v772 = vmul.f32 %v747, %v498
  %v773 = vmul.f32 %v751, %v500
  %v774 = vmul.f32 %v755, %v659
  %v775 = vmul.f32 %v759, %v661
  %v776 = vmul.f32 %v747, %v504
  %v777 = vmul.f32 %v751, %v506
  %v778 = vmul.f32 %v755, %v665
  %v779 = vmul.f32 %v759, %v667
  %v780 = vmul.f32 %v747, %v510
  %v781 = vmul.f32 %v751, %v512
  %v782 = vmul.f32 %v755, %v671
  %v783 = vmul.f32 %v759, %v673
  %v784 = vmul.f32 %v747, %v516
  %v785 = vmul.f32 %v751, %v518
  %v786 = vmul.f32 %v755, %v677
  %v787 = vmul.f32 %v759, %v679
  %v788 = vmul.f32 %v747, %v522
  %v789 = vmul.f32 %v751, %v524
  %v790 = vmul.f32 %v755, %v683
  %v791 = vmul.f32 %v759, %v685
  %v792 = vmul.f32 %v747, %v528
  %v793 = vmul.f32 %v751, %v530
  %v794 = vmul.f32 %v755, %v689
  %v795 = vmul.f32 %v759, %v691
  %v796 = vmul.f32 %v747, %v534
  %v797 = vmul.f32 %v751, %v536
  %v798 = vmul.f32 %v755, %v695
  %v799 = vmul.f32 %v759, %v697
  %v800 = vmul.f32 %v747, %v540
  %v801 = vmul.f32 %v751, %v542
  %v802 = vmul.f32 %v755, %v701
  %v803 = vmul.f32 %v759, %v703
  %v804 = vmul.f32 %v747, %v546
  %v805 = vmul.f32 %v751, %v548
  %v806 = vmul.f32 %v755, %v707
  %v807 = vmul.f32 %v759, %v709
  %v808 = vmul.f32 %v747, %v552
  %v809 = vmul.f32 %v751, %v554
  %v810 = vmul.f32 %v755, %v713
  %v811 = vmul.f32 %v759, %v715
  %v812 = vmul.f32 %v747, %v558
  %v813 = vmul.f32 %v751, %v560
  %v814 = vmul.f32 %v755, %v719
  %v815 = vmul.f32 %v759, %v721
  %v816 = vmul.f32 %v747, %v564
  %v817 = vmul.f32 %v751, %v566
  %v818 = vmul.f32 %v755, %v725
  %v819 = vmul.f32 %v759, %v727
  %v820 = vmul.f32 %v747, %v570
  %v821 = vmul.f32 %v751, %v572
  %v822 = vmul.f32 %v755, %v731
  %v823 = vmul.f32 %v759, %v733
  %v824 = vmul.f32 %v747, %v576
  %v825 = vmul.f32 %v751, %v578
  %v826 = vmul.f32 %v755, %v737
  %v827 = vmul.f32 %v759, %v739
  %v829 = vlaneseq
  %v830 = vshrl.u32 %v829, 7
  %v831 = vsub.s32 0, %v830
  %v832 = vrot.slane %v741, %v831
  %v833 = vlaneseq
  %v834 = vshrl.u32 %v833, 7
  %v835 = vsub.s32 1, %v834
  %v836 = vrot.slane %v741, %v835
  %v837 = vlaneseq
  %v838 = vshrl.u32 %v837, 7
  %v839 = vsub.s32 2, %v838
  %v840 = vrot.slane %v741, %v839
  %v841 = vlaneseq
  %v842 = vshrl.u32 %v841, 7
  %v843 = vsub.s32 3, %v842
  %v844 = vrot.slane %v741, %v843
  %v849 = vadd.f32 %v832, %v764
  %v850 = vadd.f32 %v836, %v765
  %v851 = vadd.f32 %v840, %v766
  %v852 = vadd.f32 %v844, %v767
  %v853 = vadd.f32 %v832, %v768
  %v854 = vadd.f32 %v836, %v769
  %v855 = vadd.f32 %v840, %v770
  %v856 = vadd.f32 %v844, %v771
  %v857 = vadd.f32 %v832, %v772
  %v858 = vadd.f32 %v836, %v773
  %v859 = vadd.f32 %v840, %v774
  %v860 = vadd.f32 %v844, %v775
  %v861 = vadd.f32 %v832, %v776
  %v862 = vadd.f32 %v836, %v777
  %v863 = vadd.f32 %v840, %v778
  %v864 = vadd.f32 %v844, %v779
  %v865 = vadd.f32 %v832, %v780
  %v866 = vadd.f32 %v836, %v781
  %v867 = vadd.f32 %v840, %v782
  %v868 = vadd.f32 %v844, %v783
  %v869 = vadd.f32 %v832, %v784
  %v870 = vadd.f32 %v836, %v785
  %v871 = vadd.f32 %v840, %v786
  %v872 = vadd.f32 %v844, %v787
  %v873 = vadd.f32 %v832, %v788
  %v874 = vadd.f32 %v836, %v789
  %v875 = vadd.f32 %v840, %v790
  %v876 = vadd.f32 %v844, %v791
  %v877 = vadd.f32 %v832, %v792
  %v878 = vadd.f32 %v836, %v793
  %v879 = vadd.f32 %v840, %v794
  %v880 = vadd.f32 %v844, %v795
  %v881 = vadd.f32 %v832, %v796
  %v882 = vadd.f32 %v836, %v797
  %v883 = vadd.f32 %v840, %v798
  %v884 = vadd.f32 %v844, %v799
  %v885 = vadd.f32 %v832, %v800
  %v886 = vadd.f32 %v836, %v801
  %v887 = vadd.f32 %v840, %v802
  %v888 = vadd.f32 %v844, %v803
  %v889 = vadd.f32 %v832, %v804
  %v890 = vadd.f32 %v836, %v805
  %v891 = vadd.f32 %v840, %v806
  %v892 = vadd.f32 %v844, %v807
  %v893 = vadd.f32 %v832, %v808
  %v894 = vadd.f32 %v836, %v809
  %v895 = vadd.f32 %v840, %v810
  %v896 = vadd.f32 %v844, %v811
  %v897 = vadd.f32 %v832, %v812
  %v898 = vadd.f32 %v836, %v813
  %v899 = vadd.f32 %v840, %v814
  %v900 = vadd.f32 %v844, %v815
  %v901 = vadd.f32 %v832, %v816
  %v902 = vadd.f32 %v836, %v817
  %v903 = vadd.f32 %v840, %v818
  %v904 = vadd.f32 %v844, %v819
  %v905 = vadd.f32 %v832, %v820
  %v906 = vadd.f32 %v836, %v821
  %v907 = vadd.f32 %v840, %v822
  %v908 = vadd.f32 %v844, %v823
  %v909 = vadd.f32 %v832, %v824
  %v910 = vadd.f32 %v836, %v825
  %v911 = vadd.f32 %v840, %v826
  %v912 = vadd.f32 %v844, %v827
  %v913 = vmul.f32 %v849, %v850
  %v914 = vmul.f32 %v853, %v854
  %v915 = vmul.f32 %v857, %v858
  %v916 = vmul.f32 %v861, %v862
  %v917 = vmul.f32 %v865, %v866
  %v918 = vmul.f32 %v869, %v870
  %v919 = vmul.f32 %v873, %v874
  %v920 = vmul.f32 %v877, %v878
  %v921 = vmul.f32 %v881, %v882
  %v922 = vmul.f32 %v885, %v886
  %v923 = vmul.f32 %v889, %v890
  %v924 = vmul.f32 %v893, %v894
  %v925 = vmul.f32 %v897, %v898
  %v926 = vmul.f32 %v901, %v902
  %v927 = vmul.f32 %v905, %v906
  %v928 = vmul.f32 %v909, %v910
  %v929 = vmul.f32 %v913, %v851
  %v930 = vmul.f32 %v914, %v855
  %v931 = vmul.f32 %v915, %v859
  %v932 = vmul.f32 %v916, %v863
  %v933 = vmul.f32 %v917, %v867
  %v934 = vmul.f32 %v918, %v871
  %v935 = vmul.f32 %v919, %v875
  %v936 = vmul.f32 %v920, %v879
  %v937 = vmul.f32 %v921, %v883
  %v938 = vmul.f32 %v922, %v887
  %v939 = vmul.f32 %v923, %v891
  %v940 = vmul.f32 %v924, %v895
  %v941 = vmul.f32 %v925, %v899
  %v942 = vmul.f32 %v926, %v903
  %v943 = vmul.f32 %v927, %v907
  %v944 = vmul.f32 %v928, %v911
  %v945 = vmul.f32 %v929, %v852
  %v946 = vmul.f32 %v930, %v856
  %v947 = vmul.f32 %v931, %v860
  %v948 = vmul.f32 %v932, %v864
  %v949 = vmul.f32 %v933, %v868
  %v950 = vmul.f32 %v934, %v872
  %v951 = vmul.f32 %v935, %v876
  %v952 = vmul.f32 %v936, %v880
  %v953 = vmul.f32 %v937, %v884
  %v954 = vmul.f32 %v938, %v888
  %v955 = vmul.f32 %v939, %v892
  %v956 = vmul.f32 %v940, %v896
  %v957 = vmul.f32 %v941, %v900
  %v958 = vmul.f32 %v942, %v904
  %v959 = vmul.f32 %v943, %v908
  %v960 = vmul.f32 %v944, %v912
  %v961 = vld [vmem:[%s6] sm:$0xff]
  %v962 = vld [vmem:[%s6 + $0x8] sm:$0xff]
  %v963 = vld [vmem:[%s6 + $0x10] sm:$0xff]
  %v964 = vld [vmem:[%s6 + $0x18] sm:$0xff]
  %v965 = vld [vmem:[%s6 + $0x20] sm:$0xff]
  %v966 = vld [vmem:[%s6 + $0x28] sm:$0xff]
  %v967 = vld [vmem:[%s6 + $0x30] sm:$0xff]
  %v968 = vld [vmem:[%s6 + $0x38] sm:$0xff]
  %v969 = vld [vmem:[%s6 + $0x40] sm:$0xff]
  %v970 = vld [vmem:[%s6 + $0x48] sm:$0xff]
  %v971 = vld [vmem:[%s6 + $0x50] sm:$0xff]
  %v972 = vld [vmem:[%s6 + $0x58] sm:$0xff]
  %v973 = vld [vmem:[%s6 + $0x60] sm:$0xff]
  %v974 = vld [vmem:[%s6 + $0x68] sm:$0xff]
  %v975 = vld [vmem:[%s6 + $0x70] sm:$0xff]
  %v976 = vld [vmem:[%s6 + $0x78] sm:$0xff]
  %977 = vmatprep.subr.mxu0 0.0
  %978 = vmatpush1.msra.mxu0 %v961
  %979 = vmatprep.subr.mxu0 0.0
  %980 = vmatpush1.msra.mxu0 %v962
  %981 = vmatprep.subr.mxu0 0.0
  %982 = vmatpush1.msra.mxu0 %v963
  %983 = vmatprep.subr.mxu0 0.0
  %984 = vmatpush1.msra.mxu0 %v964
  %985 = vmatprep.subr.mxu0 0.0
  %986 = vmatpush1.msra.mxu0 %v965
  %987 = vmatprep.subr.mxu0 0.0
  %988 = vmatpush1.msra.mxu0 %v966
  %989 = vmatprep.subr.mxu0 0.0
  %990 = vmatpush1.msra.mxu0 %v967
  %991 = vmatprep.subr.mxu0 0.0
  %992 = vmatpush1.msra.mxu0 %v968
  %993 = vmatprep.subr.mxu0 0.0
  %994 = vmatpush1.msra.mxu0 %v969
  %995 = vmatprep.subr.mxu0 0.0
  %996 = vmatpush1.msra.mxu0 %v970
  %997 = vmatprep.subr.mxu0 0.0
  %998 = vmatpush1.msra.mxu0 %v971
  %999 = vmatprep.subr.mxu0 0.0
  %1000 = vmatpush1.msra.mxu0 %v972
  %1001 = vmatprep.subr.mxu0 0.0
  %1002 = vmatpush1.msra.mxu0 %v973
  %1003 = vmatprep.subr.mxu0 0.0
  %1004 = vmatpush1.msra.mxu0 %v974
  %1005 = vmatprep.subr.mxu0 0.0
  %1006 = vmatpush1.msra.mxu0 %v975
  %1007 = vmatprep.subr.mxu0 0.0
  %1008 = vmatpush1.msra.mxu0 %v976
  %1009 = vmatprep.subr.mxu0 0.0
  %1010 = vmatpush1.msra.mxu0 0.0
  %1011 = vmatprep.subr.mxu0 0.0
  %1012 = vmatpush1.msra.mxu0 0.0
  %1013 = vmatprep.subr.mxu0 0.0
  %1014 = vmatpush1.msra.mxu0 0.0
  %1015 = vmatprep.subr.mxu0 0.0
  %1016 = vmatpush1.msra.mxu0 0.0
  %1017 = vmatprep.subr.mxu0 0.0
  %1018 = vmatpush1.msra.mxu0 0.0
  %1019 = vmatprep.subr.mxu0 0.0
  %1020 = vmatpush1.msra.mxu0 0.0
  %1021 = vmatprep.subr.mxu0 0.0
  %1022 = vmatpush1.msra.mxu0 0.0
  %1023 = vmatprep.subr.mxu0 0.0
  %1024 = vmatpush1.msra.mxu0 0.0
  %1025 = vmatprep.subr.mxu0 0.0
  %1026 = vmatpush1.msra.mxu0 0.0
  %1027 = vmatprep.subr.mxu0 0.0
  %1028 = vmatpush1.msra.mxu0 0.0
  %1029 = vmatprep.subr.mxu0 0.0
  %1030 = vmatpush1.msra.mxu0 0.0
  %1031 = vmatprep.subr.mxu0 0.0
  %1032 = vmatpush1.msra.mxu0 0.0
  %1033 = vmatprep.subr.mxu0 0.0
  %1034 = vmatpush1.msra.mxu0 0.0
  %1035 = vmatprep.subr.mxu0 0.0
  %1036 = vmatpush1.msra.mxu0 0.0
  %1037 = vmatprep.subr.mxu0 0.0
  %1038 = vmatpush1.msra.mxu0 0.0
  %1039 = vmatprep.subr.mxu0 0.0
  %1040 = vmatpush1.msra.mxu0 0.0
  %1041 = vmatprep.mubr.f32.mxu0 0.0
  %1042 = vmatmul.mubr.f32.gmra.mrb[0].mxu0 %v945
  %v1043 = vpop.f32.mrb[0].mxu0
  %v1044 = vadd.f32 0.0, %v1043
  %v1045 = vpop.f32.mrb[0].mxu0
  %1046 = vmatprep.mubr.f32.mxu0 0.0
  %1047 = vmatmul.mubr.f32.gmra.mrb[0].mxu0 %v946
  %v1048 = vpop.f32.mrb[0].mxu0
  %v1049 = vadd.f32 0.0, %v1048
  %v1050 = vpop.f32.mrb[0].mxu0
  %1051 = vmatprep.mubr.f32.mxu0 0.0
  %1052 = vmatmul.mubr.f32.gmra.mrb[0].mxu0 %v947
  %v1053 = vpop.f32.mrb[0].mxu0
  %v1054 = vadd.f32 0.0, %v1053
  %v1055 = vpop.f32.mrb[0].mxu0
  %1056 = vmatprep.mubr.f32.mxu0 0.0
  %1057 = vmatmul.mubr.f32.gmra.mrb[0].mxu0 %v948
  %v1058 = vpop.f32.mrb[0].mxu0
  %v1059 = vadd.f32 0.0, %v1058
  %v1060 = vpop.f32.mrb[0].mxu0
  %1061 = vmatprep.mubr.f32.mxu0 0.0
  %1062 = vmatmul.mubr.f32.gmra.mrb[0].mxu0 %v949
  %v1063 = vpop.f32.mrb[0].mxu0
  %v1064 = vadd.f32 0.0, %v1063
  %v1065 = vpop.f32.mrb[0].mxu0
  %1066 = vmatprep.mubr.f32.mxu0 0.0
  %1067 = vmatmul.mubr.f32.gmra.mrb[0].mxu0 %v950
  %v1068 = vpop.f32.mrb[0].mxu0
  %v1069 = vadd.f32 0.0, %v1068
  %v1070 = vpop.f32.mrb[0].mxu0
  %1071 = vmatprep.mubr.f32.mxu0 0.0
  %1072 = vmatmul.mubr.f32.gmra.mrb[0].mxu0 %v951
  %v1073 = vpop.f32.mrb[0].mxu0
  %v1074 = vadd.f32 0.0, %v1073
  %v1075 = vpop.f32.mrb[0].mxu0
  %1076 = vmatprep.mubr.f32.mxu0 0.0
  %1077 = vmatmul.mubr.f32.gmra.mrb[0].mxu0 %v952
  %v1078 = vpop.f32.mrb[0].mxu0
  %v1079 = vadd.f32 0.0, %v1078
  %v1080 = vpop.f32.mrb[0].mxu0
  %1081 = vmatprep.mubr.f32.mxu0 0.0
  %1082 = vmatmul.mubr.f32.gmra.mrb[0].mxu0 %v953
  %v1083 = vpop.f32.mrb[0].mxu0
  %v1084 = vadd.f32 0.0, %v1083
  %v1085 = vpop.f32.mrb[0].mxu0
  %1086 = vmatprep.mubr.f32.mxu0 0.0
  %1087 = vmatmul.mubr.f32.gmra.mrb[0].mxu0 %v954
  %v1088 = vpop.f32.mrb[0].mxu0
  %v1089 = vadd.f32 0.0, %v1088
  %v1090 = vpop.f32.mrb[0].mxu0
  %1091 = vmatprep.mubr.f32.mxu0 0.0
  %1092 = vmatmul.mubr.f32.gmra.mrb[0].mxu0 %v955
  %v1093 = vpop.f32.mrb[0].mxu0
  %v1094 = vadd.f32 0.0, %v1093
  %v1095 = vpop.f32.mrb[0].mxu0
  %1096 = vmatprep.mubr.f32.mxu0 0.0
  %1097 = vmatmul.mubr.f32.gmra.mrb[0].mxu0 %v956
  %v1098 = vpop.f32.mrb[0].mxu0
  %v1099 = vadd.f32 0.0, %v1098
  %v1100 = vpop.f32.mrb[0].mxu0
  %1101 = vmatprep.mubr.f32.mxu0 0.0
  %1102 = vmatmul.mubr.f32.gmra.mrb[0].mxu0 %v957
  %v1103 = vpop.f32.mrb[0].mxu0
  %v1104 = vadd.f32 0.0, %v1103
  %v1105 = vpop.f32.mrb[0].mxu0
  %1106 = vmatprep.mubr.f32.mxu0 0.0
  %1107 = vmatmul.mubr.f32.gmra.mrb[0].mxu0 %v958
  %v1108 = vpop.f32.mrb[0].mxu0
  %v1109 = vadd.f32 0.0, %v1108
  %v1110 = vpop.f32.mrb[0].mxu0
  %1111 = vmatprep.mubr.f32.mxu0 0.0
  %1112 = vmatmul.mubr.f32.gmra.mrb[0].mxu0 %v959
  %v1113 = vpop.f32.mrb[0].mxu0
  %v1114 = vadd.f32 0.0, %v1113
  %v1115 = vpop.f32.mrb[0].mxu0
  %1116 = vmatprep.mubr.f32.mxu0 0.0
  %1117 = vmatmul.mubr.f32.gmra.mrb[0].mxu0 %v960
  %v1118 = vpop.f32.mrb[0].mxu0
  %v1119 = vadd.f32 0.0, %v1118
  %v1120 = vpop.f32.mrb[0].mxu0
  %1121 = vdwg.mxu0
  %v1122 = vld [vmem:[%s7] sm:$0xff]
  %v1123 = vld [vmem:[%s8] sm:$0x1]
  %v1125 = vlaneseq
  %v1126 = vshrl.u32 %v1125, 7
  %v1127 = vsub.s32 0, %v1126
  %v1128 = vrot.slane %v1123, %v1127
  %vm1130 = vcmask 64512
  %v1132 = vsel %vm1130, %v1044, 0
  %v1135 = vsel %vm1130, %v1049, 0
  %v1138 = vsel %vm1130, %v1054, 0
  %v1141 = vsel %vm1130, %v1059, 0
  %v1144 = vsel %vm1130, %v1064, 0
  %v1147 = vsel %vm1130, %v1069, 0
  %v1150 = vsel %vm1130, %v1074, 0
  %v1153 = vsel %vm1130, %v1079, 0
  %v1156 = vsel %vm1130, %v1084, 0
  %v1159 = vsel %vm1130, %v1089, 0
  %v1162 = vsel %vm1130, %v1094, 0
  %v1165 = vsel %vm1130, %v1099, 0
  %v1168 = vsel %vm1130, %v1104, 0
  %v1171 = vsel %vm1130, %v1109, 0
  %v1174 = vsel %vm1130, %v1114, 0
  %v1177 = vsel %vm1130, %v1119, 0
  %1179 = vmatprep.subr.mxu0 0.0
  %1180 = vmatpush1.msra.mxu0 %v1122
  %1181 = vmatprep.subr.mxu0 0.0
  %1182 = vmatpush1.msra.mxu0 0.0
  %1183 = vmatprep.subr.mxu0 0.0
  %1184 = vmatpush1.msra.mxu0 0.0
  %1185 = vmatprep.subr.mxu0 0.0
  %1186 = vmatpush1.msra.mxu0 0.0
  %1187 = vmatprep.subr.mxu0 0.0
  %1188 = vmatpush1.msra.mxu0 0.0
  %1189 = vmatprep.subr.mxu0 0.0
  %1190 = vmatpush1.msra.mxu0 0.0
  %1191 = vmatprep.subr.mxu0 0.0
  %1192 = vmatpush1.msra.mxu0 0.0
  %1193 = vmatprep.subr.mxu0 0.0
  %1194 = vmatpush1.msra.mxu0 0.0
  %1195 = vmatprep.subr.mxu0 0.0
  %1196 = vmatpush1.msra.mxu0 0.0
  %1197 = vmatprep.subr.mxu0 0.0
  %1198 = vmatpush1.msra.mxu0 0.0
  %1199 = vmatprep.subr.mxu0 0.0
  %1200 = vmatpush1.msra.mxu0 0.0
  %1201 = vmatprep.subr.mxu0 0.0
  %1202 = vmatpush1.msra.mxu0 0.0
  %1203 = vmatprep.subr.mxu0 0.0
  %1204 = vmatpush1.msra.mxu0 0.0
  %1205 = vmatprep.subr.mxu0 0.0
  %1206 = vmatpush1.msra.mxu0 0.0
  %1207 = vmatprep.subr.mxu0 0.0
  %1208 = vmatpush1.msra.mxu0 0.0
  %1209 = vmatprep.subr.mxu0 0.0
  %1210 = vmatpush1.msra.mxu0 0.0
  %1211 = vmatprep.subr.mxu0 0.0
  %1212 = vmatpush1.msra.mxu0 0.0
  %1213 = vmatprep.subr.mxu0 0.0
  %1214 = vmatpush1.msra.mxu0 0.0
  %1215 = vmatprep.subr.mxu0 0.0
  %1216 = vmatpush1.msra.mxu0 0.0
  %1217 = vmatprep.subr.mxu0 0.0
  %1218 = vmatpush1.msra.mxu0 0.0
  %1219 = vmatprep.subr.mxu0 0.0
  %1220 = vmatpush1.msra.mxu0 0.0
  %1221 = vmatprep.subr.mxu0 0.0
  %1222 = vmatpush1.msra.mxu0 0.0
  %1223 = vmatprep.subr.mxu0 0.0
  %1224 = vmatpush1.msra.mxu0 0.0
  %1225 = vmatprep.subr.mxu0 0.0
  %1226 = vmatpush1.msra.mxu0 0.0
  %1227 = vmatprep.subr.mxu0 0.0
  %1228 = vmatpush1.msra.mxu0 0.0
  %1229 = vmatprep.subr.mxu0 0.0
  %1230 = vmatpush1.msra.mxu0 0.0
  %1231 = vmatprep.subr.mxu0 0.0
  %1232 = vmatpush1.msra.mxu0 0.0
  %1233 = vmatprep.subr.mxu0 0.0
  %1234 = vmatpush1.msra.mxu0 0.0
  %1235 = vmatprep.subr.mxu0 0.0
  %1236 = vmatpush1.msra.mxu0 0.0
  %1237 = vmatprep.subr.mxu0 0.0
  %1238 = vmatpush1.msra.mxu0 0.0
  %1239 = vmatprep.subr.mxu0 0.0
  %1240 = vmatpush1.msra.mxu0 0.0
  %1241 = vmatprep.subr.mxu0 0.0
  %1242 = vmatpush1.msra.mxu0 0.0
  %1243 = vmatprep.mubr.f32.mxu0 0.0
  %1244 = vmatmul.mubr.f32.gmra.mrb[0].mxu0 %v1132
  %v1245 = vpop.f32.mrb[0].mxu0
  %v1246 = vadd.f32 %v1128, %v1245
  %v1247 = vpop.f32.mrb[0].mxu0
  %1248 = vmatprep.mubr.f32.mxu0 0.0
  %1249 = vmatmul.mubr.f32.gmra.mrb[0].mxu0 %v1135
  %v1250 = vpop.f32.mrb[0].mxu0
  %v1251 = vadd.f32 %v1128, %v1250
  %v1252 = vpop.f32.mrb[0].mxu0
  %1253 = vmatprep.mubr.f32.mxu0 0.0
  %1254 = vmatmul.mubr.f32.gmra.mrb[0].mxu0 %v1138
  %v1255 = vpop.f32.mrb[0].mxu0
  %v1256 = vadd.f32 %v1128, %v1255
  %v1257 = vpop.f32.mrb[0].mxu0
  %1258 = vmatprep.mubr.f32.mxu0 0.0
  %1259 = vmatmul.mubr.f32.gmra.mrb[0].mxu0 %v1141
  %v1260 = vpop.f32.mrb[0].mxu0
  %v1261 = vadd.f32 %v1128, %v1260
  %v1262 = vpop.f32.mrb[0].mxu0
  %1263 = vmatprep.mubr.f32.mxu0 0.0
  %1264 = vmatmul.mubr.f32.gmra.mrb[0].mxu0 %v1144
  %v1265 = vpop.f32.mrb[0].mxu0
  %v1266 = vadd.f32 %v1128, %v1265
  %v1267 = vpop.f32.mrb[0].mxu0
  %1268 = vmatprep.mubr.f32.mxu0 0.0
  %1269 = vmatmul.mubr.f32.gmra.mrb[0].mxu0 %v1147
  %v1270 = vpop.f32.mrb[0].mxu0
  %v1271 = vadd.f32 %v1128, %v1270
  %v1272 = vpop.f32.mrb[0].mxu0
  %1273 = vmatprep.mubr.f32.mxu0 0.0
  %1274 = vmatmul.mubr.f32.gmra.mrb[0].mxu0 %v1150
  %v1275 = vpop.f32.mrb[0].mxu0
  %v1276 = vadd.f32 %v1128, %v1275
  %v1277 = vpop.f32.mrb[0].mxu0
  %1278 = vmatprep.mubr.f32.mxu0 0.0
  %1279 = vmatmul.mubr.f32.gmra.mrb[0].mxu0 %v1153
  %v1280 = vpop.f32.mrb[0].mxu0
  %v1281 = vadd.f32 %v1128, %v1280
  %v1282 = vpop.f32.mrb[0].mxu0
  %1283 = vmatprep.mubr.f32.mxu0 0.0
  %1284 = vmatmul.mubr.f32.gmra.mrb[0].mxu0 %v1156
  %v1285 = vpop.f32.mrb[0].mxu0
  %v1286 = vadd.f32 %v1128, %v1285
  %v1287 = vpop.f32.mrb[0].mxu0
  %1288 = vmatprep.mubr.f32.mxu0 0.0
  %1289 = vmatmul.mubr.f32.gmra.mrb[0].mxu0 %v1159
  %v1290 = vpop.f32.mrb[0].mxu0
  %v1291 = vadd.f32 %v1128, %v1290
  %v1292 = vpop.f32.mrb[0].mxu0
  %1293 = vmatprep.mubr.f32.mxu0 0.0
  %1294 = vmatmul.mubr.f32.gmra.mrb[0].mxu0 %v1162
  %v1295 = vpop.f32.mrb[0].mxu0
  %v1296 = vadd.f32 %v1128, %v1295
  %v1297 = vpop.f32.mrb[0].mxu0
  %1298 = vmatprep.mubr.f32.mxu0 0.0
  %1299 = vmatmul.mubr.f32.gmra.mrb[0].mxu0 %v1165
  %v1300 = vpop.f32.mrb[0].mxu0
  %v1301 = vadd.f32 %v1128, %v1300
  %v1302 = vpop.f32.mrb[0].mxu0
  %1303 = vmatprep.mubr.f32.mxu0 0.0
  %1304 = vmatmul.mubr.f32.gmra.mrb[0].mxu0 %v1168
  %v1305 = vpop.f32.mrb[0].mxu0
  %v1306 = vadd.f32 %v1128, %v1305
  %v1307 = vpop.f32.mrb[0].mxu0
  %1308 = vmatprep.mubr.f32.mxu0 0.0
  %1309 = vmatmul.mubr.f32.gmra.mrb[0].mxu0 %v1171
  %v1310 = vpop.f32.mrb[0].mxu0
  %v1311 = vadd.f32 %v1128, %v1310
  %v1312 = vpop.f32.mrb[0].mxu0
  %1313 = vmatprep.mubr.f32.mxu0 0.0
  %1314 = vmatmul.mubr.f32.gmra.mrb[0].mxu0 %v1174
  %v1315 = vpop.f32.mrb[0].mxu0
  %v1316 = vadd.f32 %v1128, %v1315
  %v1317 = vpop.f32.mrb[0].mxu0
  %1318 = vmatprep.mubr.f32.mxu0 0.0
  %1319 = vmatmul.mubr.f32.gmra.mrb[0].mxu0 %v1177
  %v1320 = vpop.f32.mrb[0].mxu0
  %v1321 = vadd.f32 %v1128, %v1320
  %v1322 = vpop.f32.mrb[0].mxu0
  %1323 = vdwg.mxu0
  %v1324 = vsel %vm1130, %v1246, -inf
  %1325 = vmax.xlane.f32.xlu0 %v1324
  %v1326 = vpop.xlane.xlu0 %1325
  %v1327 = vsel %vm1130, %v1251, -inf
  %1328 = vmax.xlane.f32.xlu0 %v1327
  %v1329 = vpop.xlane.xlu0 %1328
  %v1330 = vsel %vm1130, %v1256, -inf
  %1331 = vmax.xlane.f32.xlu0 %v1330
  %v1332 = vpop.xlane.xlu0 %1331
  %v1333 = vsel %vm1130, %v1261, -inf
  %1334 = vmax.xlane.f32.xlu0 %v1333
  %v1335 = vpop.xlane.xlu0 %1334
  %v1336 = vsel %vm1130, %v1266, -inf
  %1337 = vmax.xlane.f32.xlu0 %v1336
  %v1338 = vpop.xlane.xlu0 %1337
  %v1339 = vsel %vm1130, %v1271, -inf
  %1340 = vmax.xlane.f32.xlu0 %v1339
  %v1341 = vpop.xlane.xlu0 %1340
  %v1342 = vsel %vm1130, %v1276, -inf
  %1343 = vmax.xlane.f32.xlu0 %v1342
  %v1344 = vpop.xlane.xlu0 %1343
  %v1345 = vsel %vm1130, %v1281, -inf
  %1346 = vmax.xlane.f32.xlu0 %v1345
  %v1347 = vpop.xlane.xlu0 %1346
  %v1348 = vsel %vm1130, %v1286, -inf
  %1349 = vmax.xlane.f32.xlu0 %v1348
  %v1350 = vpop.xlane.xlu0 %1349
  %v1351 = vsel %vm1130, %v1291, -inf
  %1352 = vmax.xlane.f32.xlu0 %v1351
  %v1353 = vpop.xlane.xlu0 %1352
  %v1354 = vsel %vm1130, %v1296, -inf
  %1355 = vmax.xlane.f32.xlu0 %v1354
  %v1356 = vpop.xlane.xlu0 %1355
  %v1357 = vsel %vm1130, %v1301, -inf
  %1358 = vmax.xlane.f32.xlu0 %v1357
  %v1359 = vpop.xlane.xlu0 %1358
  %v1360 = vsel %vm1130, %v1306, -inf
  %1361 = vmax.xlane.f32.xlu0 %v1360
  %v1362 = vpop.xlane.xlu0 %1361
  %v1363 = vsel %vm1130, %v1311, -inf
  %1364 = vmax.xlane.f32.xlu0 %v1363
  %v1365 = vpop.xlane.xlu0 %1364
  %v1366 = vsel %vm1130, %v1316, -inf
  %1367 = vmax.xlane.f32.xlu0 %v1366
  %v1368 = vpop.xlane.xlu0 %1367
  %v1369 = vsel %vm1130, %v1321, -inf
  %1370 = vmax.xlane.f32.xlu0 %v1369
  %v1371 = vpop.xlane.xlu0 %1370
  %v1372 = vsub.f32 %v1246, %v1326
  %v1373 = vsub.f32 %v1251, %v1329
  %v1374 = vsub.f32 %v1256, %v1332
  %v1375 = vsub.f32 %v1261, %v1335
  %v1376 = vsub.f32 %v1266, %v1338
  %v1377 = vsub.f32 %v1271, %v1341
  %v1378 = vsub.f32 %v1276, %v1344
  %v1379 = vsub.f32 %v1281, %v1347
  %v1380 = vsub.f32 %v1286, %v1350
  %v1381 = vsub.f32 %v1291, %v1353
  %v1382 = vsub.f32 %v1296, %v1356
  %v1383 = vsub.f32 %v1301, %v1359
  %v1384 = vsub.f32 %v1306, %v1362
  %v1385 = vsub.f32 %v1311, %v1365
  %v1386 = vsub.f32 %v1316, %v1368
  %v1387 = vsub.f32 %v1321, %v1371
  %v1388 = vmul.f32 %v1372, 1.442695
  %v1389 = vpow.pop %v1388
  %v1390 = vmul.f32 %v1373, 1.442695
  %v1391 = vpow.pop %v1390
  %v1392 = vmul.f32 %v1374, 1.442695
  %v1393 = vpow.pop %v1392
  %v1394 = vmul.f32 %v1375, 1.442695
  %v1395 = vpow.pop %v1394
  %v1396 = vmul.f32 %v1376, 1.442695
  %v1397 = vpow.pop %v1396
  %v1398 = vmul.f32 %v1377, 1.442695
  %v1399 = vpow.pop %v1398
  %v1400 = vmul.f32 %v1378, 1.442695
  %v1401 = vpow.pop %v1400
  %v1402 = vmul.f32 %v1379, 1.442695
  %v1403 = vpow.pop %v1402
  %v1404 = vmul.f32 %v1380, 1.442695
  %v1405 = vpow.pop %v1404
  %v1406 = vmul.f32 %v1381, 1.442695
  %v1407 = vpow.pop %v1406
  %v1408 = vmul.f32 %v1382, 1.442695
  %v1409 = vpow.pop %v1408
  %v1410 = vmul.f32 %v1383, 1.442695
  %v1411 = vpow.pop %v1410
  %v1412 = vmul.f32 %v1384, 1.442695
  %v1413 = vpow.pop %v1412
  %v1414 = vmul.f32 %v1385, 1.442695
  %v1415 = vpow.pop %v1414
  %v1416 = vmul.f32 %v1386, 1.442695
  %v1417 = vpow.pop %v1416
  %v1418 = vmul.f32 %v1387, 1.442695
  %v1419 = vpow.pop %v1418
  %v1420 = vsel %vm1130, %v1389, 0.0
  %1421 = vadd.xlane.f32.xlu0 %v1420
  %v1422 = vpop.xlane.xlu0 %1421
  %v1423 = vsel %vm1130, %v1391, 0.0
  %1424 = vadd.xlane.f32.xlu0 %v1423
  %v1425 = vpop.xlane.xlu0 %1424
  %v1426 = vsel %vm1130, %v1393, 0.0
  %1427 = vadd.xlane.f32.xlu0 %v1426
  %v1428 = vpop.xlane.xlu0 %1427
  %v1429 = vsel %vm1130, %v1395, 0.0
  %1430 = vadd.xlane.f32.xlu0 %v1429
  %v1431 = vpop.xlane.xlu0 %1430
  %v1432 = vsel %vm1130, %v1397, 0.0
  %1433 = vadd.xlane.f32.xlu0 %v1432
  %v1434 = vpop.xlane.xlu0 %1433
  %v1435 = vsel %vm1130, %v1399, 0.0
  %1436 = vadd.xlane.f32.xlu0 %v1435
  %v1437 = vpop.xlane.xlu0 %1436
  %v1438 = vsel %vm1130, %v1401, 0.0
  %1439 = vadd.xlane.f32.xlu0 %v1438
  %v1440 = vpop.xlane.xlu0 %1439
  %v1441 = vsel %vm1130, %v1403, 0.0
  %1442 = vadd.xlane.f32.xlu0 %v1441
  %v1443 = vpop.xlane.xlu0 %1442
  %v1444 = vsel %vm1130, %v1405, 0.0
  %1445 = vadd.xlane.f32.xlu0 %v1444
  %v1446 = vpop.xlane.xlu0 %1445
  %v1447 = vsel %vm1130, %v1407, 0.0
  %1448 = vadd.xlane.f32.xlu0 %v1447
  %v1449 = vpop.xlane.xlu0 %1448
  %v1450 = vsel %vm1130, %v1409, 0.0
  %1451 = vadd.xlane.f32.xlu0 %v1450
  %v1452 = vpop.xlane.xlu0 %1451
  %v1453 = vsel %vm1130, %v1411, 0.0
  %1454 = vadd.xlane.f32.xlu0 %v1453
  %v1455 = vpop.xlane.xlu0 %1454
  %v1456 = vsel %vm1130, %v1413, 0.0
  %1457 = vadd.xlane.f32.xlu0 %v1456
  %v1458 = vpop.xlane.xlu0 %1457
  %v1459 = vsel %vm1130, %v1415, 0.0
  %1460 = vadd.xlane.f32.xlu0 %v1459
  %v1461 = vpop.xlane.xlu0 %1460
  %v1462 = vsel %vm1130, %v1417, 0.0
  %1463 = vadd.xlane.f32.xlu0 %v1462
  %v1464 = vpop.xlane.xlu0 %1463
  %v1465 = vsel %vm1130, %v1419, 0.0
  %1466 = vadd.xlane.f32.xlu0 %v1465
  %v1467 = vpop.xlane.xlu0 %1466
  %v1468 = vrcp.pop %v1422
  %v1469 = vrcp.pop %v1425
  %v1470 = vrcp.pop %v1428
  %v1471 = vrcp.pop %v1431
  %v1472 = vrcp.pop %v1434
  %v1473 = vrcp.pop %v1437
  %v1474 = vrcp.pop %v1440
  %v1475 = vrcp.pop %v1443
  %v1476 = vrcp.pop %v1446
  %v1477 = vrcp.pop %v1449
  %v1478 = vrcp.pop %v1452
  %v1479 = vrcp.pop %v1455
  %v1480 = vrcp.pop %v1458
  %v1481 = vrcp.pop %v1461
  %v1482 = vrcp.pop %v1464
  %v1483 = vrcp.pop %v1467
  %v1484 = vmul.f32 %v1389, %v1468
  %v1485 = vmul.f32 %v1391, %v1469
  %v1486 = vmul.f32 %v1393, %v1470
  %v1487 = vmul.f32 %v1395, %v1471
  %v1488 = vmul.f32 %v1397, %v1472
  %v1489 = vmul.f32 %v1399, %v1473
  %v1490 = vmul.f32 %v1401, %v1474
  %v1491 = vmul.f32 %v1403, %v1475
  %v1492 = vmul.f32 %v1405, %v1476
  %v1493 = vmul.f32 %v1407, %v1477
  %v1494 = vmul.f32 %v1409, %v1478
  %v1495 = vmul.f32 %v1411, %v1479
  %v1496 = vmul.f32 %v1413, %v1480
  %v1497 = vmul.f32 %v1415, %v1481
  %v1498 = vmul.f32 %v1417, %v1482
  %v1499 = vmul.f32 %v1419, %v1483
  %v1500 = vmul.f32 %v1044, %v1484
  %v1501 = vmul.f32 %v1049, %v1485
  %v1502 = vmul.f32 %v1054, %v1486
  %v1503 = vmul.f32 %v1059, %v1487
  %v1504 = vmul.f32 %v1064, %v1488
  %v1505 = vmul.f32 %v1069, %v1489
  %v1506 = vmul.f32 %v1074, %v1490
  %v1507 = vmul.f32 %v1079, %v1491
  %v1508 = vmul.f32 %v1084, %v1492
  %v1509 = vmul.f32 %v1089, %v1493
  %v1510 = vmul.f32 %v1094, %v1494
  %v1511 = vmul.f32 %v1099, %v1495
  %v1512 = vmul.f32 %v1104, %v1496
  %v1513 = vmul.f32 %v1109, %v1497
  %v1514 = vmul.f32 %v1114, %v1498
  %v1515 = vmul.f32 %v1119, %v1499
  %v1516 = vld [vmem:[%s9] sm:$0xff]
  %v1517 = vld [vmem:[%s10] sm:$0x1]
  %v1519 = vlaneseq
  %v1520 = vshrl.u32 %v1519, 7
  %v1521 = vsub.s32 0, %v1520
  %v1522 = vrot.slane %v1517, %v1521
  %v1525 = vsel %vm1130, %v1500, 0
  %v1528 = vsel %vm1130, %v1501, 0
  %v1531 = vsel %vm1130, %v1502, 0
  %v1534 = vsel %vm1130, %v1503, 0
  %v1537 = vsel %vm1130, %v1504, 0
  %v1540 = vsel %vm1130, %v1505, 0
  %v1543 = vsel %vm1130, %v1506, 0
  %v1546 = vsel %vm1130, %v1507, 0
  %v1549 = vsel %vm1130, %v1508, 0
  %v1552 = vsel %vm1130, %v1509, 0
  %v1555 = vsel %vm1130, %v1510, 0
  %v1558 = vsel %vm1130, %v1511, 0
  %v1561 = vsel %vm1130, %v1512, 0
  %v1564 = vsel %vm1130, %v1513, 0
  %v1567 = vsel %vm1130, %v1514, 0
  %v1570 = vsel %vm1130, %v1515, 0
  %1572 = vmatprep.subr.mxu0 0.0
  %1573 = vmatpush1.msra.mxu0 %v1516
  %1574 = vmatprep.subr.mxu0 0.0
  %1575 = vmatpush1.msra.mxu0 0.0
  %1576 = vmatprep.subr.mxu0 0.0
  %1577 = vmatpush1.msra.mxu0 0.0
  %1578 = vmatprep.subr.mxu0 0.0
  %1579 = vmatpush1.msra.mxu0 0.0
  %1580 = vmatprep.subr.mxu0 0.0
  %1581 = vmatpush1.msra.mxu0 0.0
  %1582 = vmatprep.subr.mxu0 0.0
  %1583 = vmatpush1.msra.mxu0 0.0
  %1584 = vmatprep.subr.mxu0 0.0
  %1585 = vmatpush1.msra.mxu0 0.0
  %1586 = vmatprep.subr.mxu0 0.0
  %1587 = vmatpush1.msra.mxu0 0.0
  %1588 = vmatprep.subr.mxu0 0.0
  %1589 = vmatpush1.msra.mxu0 0.0
  %1590 = vmatprep.subr.mxu0 0.0
  %1591 = vmatpush1.msra.mxu0 0.0
  %1592 = vmatprep.subr.mxu0 0.0
  %1593 = vmatpush1.msra.mxu0 0.0
  %1594 = vmatprep.subr.mxu0 0.0
  %1595 = vmatpush1.msra.mxu0 0.0
  %1596 = vmatprep.subr.mxu0 0.0
  %1597 = vmatpush1.msra.mxu0 0.0
  %1598 = vmatprep.subr.mxu0 0.0
  %1599 = vmatpush1.msra.mxu0 0.0
  %1600 = vmatprep.subr.mxu0 0.0
  %1601 = vmatpush1.msra.mxu0 0.0
  %1602 = vmatprep.subr.mxu0 0.0
  %1603 = vmatpush1.msra.mxu0 0.0
  %1604 = vmatprep.subr.mxu0 0.0
  %1605 = vmatpush1.msra.mxu0 0.0
  %1606 = vmatprep.subr.mxu0 0.0
  %1607 = vmatpush1.msra.mxu0 0.0
  %1608 = vmatprep.subr.mxu0 0.0
  %1609 = vmatpush1.msra.mxu0 0.0
  %1610 = vmatprep.subr.mxu0 0.0
  %1611 = vmatpush1.msra.mxu0 0.0
  %1612 = vmatprep.subr.mxu0 0.0
  %1613 = vmatpush1.msra.mxu0 0.0
  %1614 = vmatprep.subr.mxu0 0.0
  %1615 = vmatpush1.msra.mxu0 0.0
  %1616 = vmatprep.subr.mxu0 0.0
  %1617 = vmatpush1.msra.mxu0 0.0
  %1618 = vmatprep.subr.mxu0 0.0
  %1619 = vmatpush1.msra.mxu0 0.0
  %1620 = vmatprep.subr.mxu0 0.0
  %1621 = vmatpush1.msra.mxu0 0.0
  %1622 = vmatprep.subr.mxu0 0.0
  %1623 = vmatpush1.msra.mxu0 0.0
  %1624 = vmatprep.subr.mxu0 0.0
  %1625 = vmatpush1.msra.mxu0 0.0
  %1626 = vmatprep.subr.mxu0 0.0
  %1627 = vmatpush1.msra.mxu0 0.0
  %1628 = vmatprep.subr.mxu0 0.0
  %1629 = vmatpush1.msra.mxu0 0.0
  %1630 = vmatprep.subr.mxu0 0.0
  %1631 = vmatpush1.msra.mxu0 0.0
  %1632 = vmatprep.subr.mxu0 0.0
  %1633 = vmatpush1.msra.mxu0 0.0
  %1634 = vmatprep.subr.mxu0 0.0
  %1635 = vmatpush1.msra.mxu0 0.0
  %1636 = vmatprep.mubr.f32.mxu0 0.0
  %1637 = vmatmul.mubr.f32.gmra.mrb[0].mxu0 %v1525
  %v1638 = vpop.f32.mrb[0].mxu0
  %v1639 = vadd.f32 %v1522, %v1638
  %v1640 = vpop.f32.mrb[0].mxu0
  %1641 = vmatprep.mubr.f32.mxu0 0.0
  %1642 = vmatmul.mubr.f32.gmra.mrb[0].mxu0 %v1528
  %v1643 = vpop.f32.mrb[0].mxu0
  %v1644 = vadd.f32 %v1522, %v1643
  %v1645 = vpop.f32.mrb[0].mxu0
  %1646 = vmatprep.mubr.f32.mxu0 0.0
  %1647 = vmatmul.mubr.f32.gmra.mrb[0].mxu0 %v1531
  %v1648 = vpop.f32.mrb[0].mxu0
  %v1649 = vadd.f32 %v1522, %v1648
  %v1650 = vpop.f32.mrb[0].mxu0
  %1651 = vmatprep.mubr.f32.mxu0 0.0
  %1652 = vmatmul.mubr.f32.gmra.mrb[0].mxu0 %v1534
  %v1653 = vpop.f32.mrb[0].mxu0
  %v1654 = vadd.f32 %v1522, %v1653
  %v1655 = vpop.f32.mrb[0].mxu0
  %1656 = vmatprep.mubr.f32.mxu0 0.0
  %1657 = vmatmul.mubr.f32.gmra.mrb[0].mxu0 %v1537
  %v1658 = vpop.f32.mrb[0].mxu0
  %v1659 = vadd.f32 %v1522, %v1658
  %v1660 = vpop.f32.mrb[0].mxu0
  %1661 = vmatprep.mubr.f32.mxu0 0.0
  %1662 = vmatmul.mubr.f32.gmra.mrb[0].mxu0 %v1540
  %v1663 = vpop.f32.mrb[0].mxu0
  %v1664 = vadd.f32 %v1522, %v1663
  %v1665 = vpop.f32.mrb[0].mxu0
  %1666 = vmatprep.mubr.f32.mxu0 0.0
  %1667 = vmatmul.mubr.f32.gmra.mrb[0].mxu0 %v1543
  %v1668 = vpop.f32.mrb[0].mxu0
  %v1669 = vadd.f32 %v1522, %v1668
  %v1670 = vpop.f32.mrb[0].mxu0
  %1671 = vmatprep.mubr.f32.mxu0 0.0
  %1672 = vmatmul.mubr.f32.gmra.mrb[0].mxu0 %v1546
  %v1673 = vpop.f32.mrb[0].mxu0
  %v1674 = vadd.f32 %v1522, %v1673
  %v1675 = vpop.f32.mrb[0].mxu0
  %1676 = vmatprep.mubr.f32.mxu0 0.0
  %1677 = vmatmul.mubr.f32.gmra.mrb[0].mxu0 %v1549
  %v1678 = vpop.f32.mrb[0].mxu0
  %v1679 = vadd.f32 %v1522, %v1678
  %v1680 = vpop.f32.mrb[0].mxu0
  %1681 = vmatprep.mubr.f32.mxu0 0.0
  %1682 = vmatmul.mubr.f32.gmra.mrb[0].mxu0 %v1552
  %v1683 = vpop.f32.mrb[0].mxu0
  %v1684 = vadd.f32 %v1522, %v1683
  %v1685 = vpop.f32.mrb[0].mxu0
  %1686 = vmatprep.mubr.f32.mxu0 0.0
  %1687 = vmatmul.mubr.f32.gmra.mrb[0].mxu0 %v1555
  %v1688 = vpop.f32.mrb[0].mxu0
  %v1689 = vadd.f32 %v1522, %v1688
  %v1690 = vpop.f32.mrb[0].mxu0
  %1691 = vmatprep.mubr.f32.mxu0 0.0
  %1692 = vmatmul.mubr.f32.gmra.mrb[0].mxu0 %v1558
  %v1693 = vpop.f32.mrb[0].mxu0
  %v1694 = vadd.f32 %v1522, %v1693
  %v1695 = vpop.f32.mrb[0].mxu0
  %1696 = vmatprep.mubr.f32.mxu0 0.0
  %1697 = vmatmul.mubr.f32.gmra.mrb[0].mxu0 %v1561
  %v1698 = vpop.f32.mrb[0].mxu0
  %v1699 = vadd.f32 %v1522, %v1698
  %v1700 = vpop.f32.mrb[0].mxu0
  %1701 = vmatprep.mubr.f32.mxu0 0.0
  %1702 = vmatmul.mubr.f32.gmra.mrb[0].mxu0 %v1564
  %v1703 = vpop.f32.mrb[0].mxu0
  %v1704 = vadd.f32 %v1522, %v1703
  %v1705 = vpop.f32.mrb[0].mxu0
  %1706 = vmatprep.mubr.f32.mxu0 0.0
  %1707 = vmatmul.mubr.f32.gmra.mrb[0].mxu0 %v1567
  %v1708 = vpop.f32.mrb[0].mxu0
  %v1709 = vadd.f32 %v1522, %v1708
  %v1710 = vpop.f32.mrb[0].mxu0
  %1711 = vmatprep.mubr.f32.mxu0 0.0
  %1712 = vmatmul.mubr.f32.gmra.mrb[0].mxu0 %v1570
  %v1713 = vpop.f32.mrb[0].mxu0
  %v1714 = vadd.f32 %v1522, %v1713
  %v1715 = vpop.f32.mrb[0].mxu0
  %1716 = vdwg.mxu0
  %1717 = vst.msk [vmem:[%s11] sm:$0xff] %vm65, %v1639
  %1718 = vst.msk [vmem:[%s11 + $0x8] sm:$0xff] %vm65, %v1644
  %1719 = vst.msk [vmem:[%s11 + $0x10] sm:$0xff] %vm65, %v1649
  %1720 = vst.msk [vmem:[%s11 + $0x18] sm:$0xff] %vm65, %v1654
  %1721 = vst.msk [vmem:[%s11 + $0x20] sm:$0xff] %vm65, %v1659
  %1722 = vst.msk [vmem:[%s11 + $0x28] sm:$0xff] %vm65, %v1664
  %1723 = vst.msk [vmem:[%s11 + $0x30] sm:$0xff] %vm65, %v1669
  %1724 = vst.msk [vmem:[%s11 + $0x38] sm:$0xff] %vm65, %v1674
  %1725 = vst.msk [vmem:[%s11 + $0x40] sm:$0xff] %vm65, %v1679
  %1726 = vst.msk [vmem:[%s11 + $0x48] sm:$0xff] %vm65, %v1684
  %1727 = vst.msk [vmem:[%s11 + $0x50] sm:$0xff] %vm65, %v1689
  %1728 = vst.msk [vmem:[%s11 + $0x58] sm:$0xff] %vm65, %v1694
  %1729 = vst.msk [vmem:[%s11 + $0x60] sm:$0xff] %vm65, %v1699
  %1730 = vst.msk [vmem:[%s11 + $0x68] sm:$0xff] %vm65, %v1704
  %1731 = vst.msk [vmem:[%s11 + $0x70] sm:$0xff] %vm65, %v1709
  %1732 = vst.msk [vmem:[%s11 + $0x78] sm:$0xff] %vm65, %v1714
  // Predicated region
  $region46: #{tpu_custom_call.1} parent=0 // pred_check
    _
  $region47: #{tpu_custom_call.1} parent=0 // pred_check_branch
    %1734 = sbr.rel (0) target = $region49
  $region48: #{tpu_custom_call.1} parent=0 // pred_region
    _
  $region49: #{tpu_custom_call.1} parent=0 // pred_fallthru
    _
  // Predicated region
  $region50: #{tpu_custom_call.1} parent=0 // pred_check
    _
  $region51: #{tpu_custom_call.1} parent=0 // pred_check_branch
    %1736 = sbr.rel (0) target = $region53
  $region52: #{tpu_custom_call.1} parent=0 // pred_region
    _
  $region53: #{tpu_custom_call.1} parent=0 // pred_fallthru
    _

</llo_original>
